<compile_context>
chip_gen: v5e
topology: v5e:2x2
jax: 0.10.0
libtpu: 0.0.40
codegen_flags: <defaults>
</compile_context>

<pallas_src>
import jax
import jax.numpy as jnp
import numpy as np
from jax.experimental import pallas as pl
from jax.experimental.pallas import tpu as pltpu


def _round_up(x, m):
    return ((x + m - 1) // m) * m


# ---------------------------------------------------------------------------
# Pallas kernels
# ---------------------------------------------------------------------------
def conv_relu_pool_kernel(p_ref, w_ref, b_ref, o_ref):
    """Fused im2col-conv + 2x2 max-pool + bias + ReLU, transposed / lane-dense.

    p_ref: [4, KKC, tn]   4 pool positions (TL/TR/BL/BR); KKC = K*K*Cin;
                          column n = flattened pooled output position (b, yo, xo)
    w_ref: [Cout, KKC]    resident across the grid
    b_ref: [Cout, 1]      resident across the grid
    o_ref: [Cout, tn]     lane-dense output tile
    """
    w = w_ref[...]
    d0 = jnp.dot(w, p_ref[0], preferred_element_type=jnp.float32)
    d1 = jnp.dot(w, p_ref[1], preferred_element_type=jnp.float32)
    d2 = jnp.dot(w, p_ref[2], preferred_element_type=jnp.float32)
    d3 = jnp.dot(w, p_ref[3], preferred_element_type=jnp.float32)
    m = jnp.maximum(jnp.maximum(d0, d1), jnp.maximum(d2, d3))
    o_ref[...] = jnp.maximum(m + b_ref[...], 0.0)   # bias + ReLU once (hoisted out of branches)


def linear_kernel(x_ref, w_ref, b_ref, o_ref):
    """o = x @ w + b.  x: [B, F], w: [F, D], b: [1, D], o: [B, D]."""
    o_ref[...] = jnp.dot(x_ref[...], w_ref[...],
                         preferred_element_type=jnp.float32) + b_ref[...]


# ---------------------------------------------------------------------------
# Wrappers (glue in plain JAX, compute in Pallas)
# ---------------------------------------------------------------------------
def _im2col_pool_t(x_nhwc, K, pad):
    """Transposed im2col patches grouped by 2x2 pool position.

    Returns [4, K*K*Cin, B*Ho*Wo]; rows ordered (ky, kx, cin), columns (b, yo, xo).
    Built directly per pool position (no [B,H,W,K,K,C] intermediate).
    """
    B, H, W, C = x_nhwc.shape
    Ho, Wo = H // 2, W // 2
    # +1 extra pad on the high side keeps all strided slice stops in-bounds (never read).
    xp = jnp.pad(x_nhwc, ((0, 0), (pad, pad + 1), (pad, pad + 1), (0, 0)))
    blocks = []
    for py in range(2):
        for px in range(2):
            taps = []
            for ky in range(K):
                for kx in range(K):
                    y0, x0 = py + ky, px + kx
                    taps.append(xp[:, y0:y0 + 2 * Ho:2, x0:x0 + 2 * Wo:2, :])  # [B,Ho,Wo,C]
            p = jnp.stack(taps, axis=0)                 # [K*K, B, Ho, Wo, C]
            p = jnp.transpose(p, (0, 4, 1, 2, 3))       # [K*K, C, B, Ho, Wo]
            blocks.append(p.reshape(K * K * C, B * Ho * Wo))
    return jnp.stack(blocks, axis=0)                    # [4, KKC, N]


def conv_relu_pool_t(x_nhwc, w_t, b_col, K=5, pad=2, tn_max=512):
    """One CNN stage. Returns the output TRANSPOSED: [Cout, B*Ho*Wo], cols ordered (b,yo,xo)."""
    B, H, W, Cin = x_nhwc.shape
    Cout, KKC = w_t.shape
    Ho, Wo = H // 2, W // 2
    N = B * Ho * Wo
    tn = min(tn_max, _round_up(N, 128))     # lane-dense tile, multiple of 128
    N_pad = _round_up(N, tn)

    patches = _im2col_pool_t(x_nhwc, K, pad)            # [4, KKC, N]
    if N_pad != N:
        patches = jnp.pad(patches, ((0, 0), (0, 0), (0, N_pad - N)))

    out_t = pl.pallas_call(
        conv_relu_pool_kernel,
        out_shape=jax.ShapeDtypeStruct((Cout, N_pad), jnp.float32),
        grid=(N_pad // tn,),
        in_specs=[
            pl.BlockSpec((4, KKC, tn), lambda i: (0, 0, i)),   # patch tile (pipelined)
            pl.BlockSpec((Cout, KKC), lambda i: (0, 0)),       # resident weight
            pl.BlockSpec((Cout, 1), lambda i: (0, 0)),         # resident bias
        ],
        out_specs=pl.BlockSpec((Cout, tn), lambda i: (0, i)),  # lane-dense stores
        compiler_params=pltpu.CompilerParams(dimension_semantics=("parallel",)),
    )(patches, w_t, b_col)
    return out_t[:, :N]                                 # drop column padding


def linear(x, w_fd, b_row):
    """x: [B, F], w_fd: [F, D], b_row: [1, D]."""
    B, F = x.shape
    D = w_fd.shape[1]
    return pl.pallas_call(
        linear_kernel,
        out_shape=jax.ShapeDtypeStruct((B, D), jnp.float32),
        grid=(1,),
        in_specs=[
            pl.BlockSpec((B, F), lambda i: (0, 0)),
            pl.BlockSpec((F, D), lambda i: (0, 0)),
            pl.BlockSpec((1, D), lambda i: (0, 0)),
        ],
        out_specs=pl.BlockSpec((B, D), lambda i: (0, 0)),
    )(x, w_fd, b_row)


def preprocess_params(params):
    """One-time weight/bias layout transforms (hoisted out of the forward pass)."""
    def conv_w(w_oihw):
        Cout, Cin, K, _ = w_oihw.shape
        # [Cout, Cin, K, K] -> [Cout, (ky, kx, cin)] to match patch row order
        return jnp.transpose(w_oihw, (0, 2, 3, 1)).reshape(Cout, K * K * Cin)

    return {
        "w1t": conv_w(params["w1"]), "b1c": params["b1"].reshape(-1, 1),
        "w2t": conv_w(params["w2"]), "b2c": params["b2"].reshape(-1, 1),
        "wo_fd": params["wo"].T,     "bo_row": params["bo"].reshape(1, -1),
    }


def cnn_forward(x_nchw, pp):
    """Forward pass matching the PyTorch CNN module exactly."""
    B, _, H, W = x_nchw.shape
    x = jnp.transpose(x_nchw, (0, 2, 3, 1))                           # NCHW -> NHWC
    h1t = conv_relu_pool_t(x, pp["w1t"], pp["b1c"])                   # [16, B*14*14]
    C1 = h1t.shape[0]
    h1 = jnp.transpose(h1t.reshape(C1, B, H // 2, W // 2), (1, 2, 3, 0))  # NHWC [B,14,14,16]
    h2t = conv_relu_pool_t(h1, pp["w2t"], pp["b2c"])                  # [32, B*7*7]
    C2 = h2t.shape[0]
    # [C2, (b, y, x)] -> [b, (c, y, x)]  == PyTorch NCHW .view(B, -1) flatten order
    h_flat = jnp.transpose(h2t.reshape(C2, B, -1), (1, 0, 2)).reshape(B, -1)
    return linear(h_flat, pp["wo_fd"], pp["bo_row"])                  # [B, output_dim]


# ---------------------------------------------------------------------------
# Pure-JAX reference (for sanity check)
# ---------------------------------------------------------------------------
def reference_forward(x_nchw, params):
    def conv(x, w, b):
        y = jax.lax.conv_general_dilated(
            x, w, window_strides=(1, 1), padding=((2, 2), (2, 2)),
            dimension_numbers=("NCHW", "OIHW", "NCHW"),
            precision=jax.lax.Precision.HIGHEST)
        return y + b[None, :, None, None]

    def pool(x):
        return jax.lax.reduce_window(x, -jnp.inf, jax.lax.max,
                                     (1, 1, 2, 2), (1, 1, 2, 2), "VALID")

    h = pool(jax.nn.relu(conv(x_nchw, params["w1"], params["b1"])))
    h = pool(jax.nn.relu(conv(h, params["w2"], params["b2"])))
    h = h.reshape(h.shape[0], -1)
    return jnp.dot(h, params["wo"].T,
                   precision=jax.lax.Precision.HIGHEST) + params["bo"]


# ---------------------------------------------------------------------------
if __name__ == "__main__":
    output_dim = 10
    B = 2
    key = jax.random.PRNGKey(0)
    kx, k1, k2, k3, k4, k5, k6 = jax.random.split(key, 7)

    # Input: NCHW, spatial 28x28 (required so that 32*7*7 feeds the linear layer).
    x = jax.random.normal(kx, (B, 3, 28, 28), jnp.float32)

    params = {
        "w1": jax.random.normal(k1, (16, 3, 5, 5), jnp.float32) * 0.1,
        "b1": jax.random.normal(k2, (16,), jnp.float32) * 0.1,
        "w2": jax.random.normal(k3, (32, 16, 5, 5), jnp.float32) * 0.05,
        "b2": jax.random.normal(k4, (32,), jnp.float32) * 0.05,
        "wo": jax.random.normal(k5, (output_dim, 32 * 7 * 7), jnp.float32) * 0.02,
        "bo": jax.random.normal(k6, (output_dim,), jnp.float32) * 0.02,
    }

    pp = jax.tree_util.tree_map(jax.block_until_ready, preprocess_params(params))

    fwd = jax.jit(cnn_forward)
    out = jax.block_until_ready(fwd(x, pp))
    ref = jax.block_until_ready(reference_forward(x, params))

    assert out.shape == (B, output_dim), out.shape
    np.testing.assert_allclose(np.asarray(out), np.asarray(ref), rtol=2e-2, atol=2e-2)
    print("KERNEL_OK")
</pallas_src>

<mosaic_0001>
module attributes {stable_mosaic.version = 11 : i64} {
  func.func @conv_relu_pool_kernel(%arg0: i32, %arg1: memref<4x75x512xf32, #tpu.memory_space<vmem>>, %arg2: memref<16x75xf32, #tpu.memory_space<vmem>>, %arg3: memref<16x1xf32, #tpu.memory_space<vmem>>, %arg4: memref<16x512xf32, #tpu.memory_space<vmem>>) attributes {dimension_semantics = [#tpu.dimension_semantics<parallel>], iteration_bounds = array<i64: 1>, scalar_prefetch = 0 : i64, scratch_operands = 0 : i64, tpu.core_type = #tpu.core_type<tc>, window_params = [{transform_indices = @transform_0, window_bounds = array<i64: 4, 75, 512>}, {pipeline_mode = #tpu.pipeline_mode<synchronous>, transform_indices = @transform_1, window_bounds = array<i64: 16, 75>}, {pipeline_mode = #tpu.pipeline_mode<synchronous>, transform_indices = @transform_2, window_bounds = array<i64: 16, 1>}, {transform_indices = @transform_3, window_bounds = array<i64: 16, 512>}]} {
    %c0 = arith.constant 0 : index
    %c0_0 = arith.constant 0 : index
    %0 = vector.load %arg2[%c0, %c0_0] : memref<16x75xf32, #tpu.memory_space<vmem>>, vector<16x75xf32>
    %c0_1 = arith.constant 0 : index
    %c0_2 = arith.constant 0 : index
    %c0_3 = arith.constant 0 : index
    %1 = vector.load %arg1[%c0_1, %c0_2, %c0_3] : memref<4x75x512xf32, #tpu.memory_space<vmem>>, vector<1x75x512xf32>
    %2 = vector.shape_cast %1 : vector<1x75x512xf32> to vector<75x512xf32>
    %cst = arith.constant dense<0.000000e+00> : vector<16x512xf32>
    %3 = tpu.matmul %0, %2, %cst {dimension_numbers = #tpu.dot_dimension_numbers<[1], [0], [0], [1], [0, 0, 1, 1], [], []>} : vector<16x75xf32>, vector<75x512xf32>, vector<16x512xf32> -> vector<16x512xf32>
    %c1 = arith.constant 1 : index
    %c0_4 = arith.constant 0 : index
    %c0_5 = arith.constant 0 : index
    %4 = vector.load %arg1[%c1, %c0_4, %c0_5] : memref<4x75x512xf32, #tpu.memory_space<vmem>>, vector<1x75x512xf32>
    %5 = vector.shape_cast %4 : vector<1x75x512xf32> to vector<75x512xf32>
    %cst_6 = arith.constant dense<0.000000e+00> : vector<16x512xf32>
    %6 = tpu.matmul %0, %5, %cst_6 {dimension_numbers = #tpu.dot_dimension_numbers<[1], [0], [0], [1], [0, 0, 1, 1], [], []>} : vector<16x75xf32>, vector<75x512xf32>, vector<16x512xf32> -> vector<16x512xf32>
    %c2 = arith.constant 2 : index
    %c0_7 = arith.constant 0 : index
    %c0_8 = arith.constant 0 : index
    %7 = vector.load %arg1[%c2, %c0_7, %c0_8] : memref<4x75x512xf32, #tpu.memory_space<vmem>>, vector<1x75x512xf32>
    %8 = vector.shape_cast %7 : vector<1x75x512xf32> to vector<75x512xf32>
    %cst_9 = arith.constant dense<0.000000e+00> : vector<16x512xf32>
    %9 = tpu.matmul %0, %8, %cst_9 {dimension_numbers = #tpu.dot_dimension_numbers<[1], [0], [0], [1], [0, 0, 1, 1], [], []>} : vector<16x75xf32>, vector<75x512xf32>, vector<16x512xf32> -> vector<16x512xf32>
    %c3 = arith.constant 3 : index
    %c0_10 = arith.constant 0 : index
    %c0_11 = arith.constant 0 : index
    %10 = vector.load %arg1[%c3, %c0_10, %c0_11] : memref<4x75x512xf32, #tpu.memory_space<vmem>>, vector<1x75x512xf32>
    %11 = vector.shape_cast %10 : vector<1x75x512xf32> to vector<75x512xf32>
    %cst_12 = arith.constant dense<0.000000e+00> : vector<16x512xf32>
    %12 = tpu.matmul %0, %11, %cst_12 {dimension_numbers = #tpu.dot_dimension_numbers<[1], [0], [0], [1], [0, 0, 1, 1], [], []>} : vector<16x75xf32>, vector<75x512xf32>, vector<16x512xf32> -> vector<16x512xf32>
    %13 = arith.maximumf %3, %6 : vector<16x512xf32>
    %14 = arith.maximumf %9, %12 : vector<16x512xf32>
    %15 = arith.maximumf %13, %14 : vector<16x512xf32>
    %c0_13 = arith.constant 0 : index
    %c0_14 = arith.constant 0 : index
    %16 = vector.load %arg3[%c0_13, %c0_14] : memref<16x1xf32, #tpu.memory_space<vmem>>, vector<16x1xf32>
    %17 = vector.broadcast %16 : vector<16x1xf32> to vector<16x512xf32>
    %18 = arith.addf %15, %17 : vector<16x512xf32>
    %cst_15 = arith.constant 0.000000e+00 : f32
    %19 = vector.broadcast %cst_15 : f32 to vector<16x512xf32>
    %20 = arith.maximumf %18, %19 : vector<16x512xf32>
    %c0_16 = arith.constant 0 : index
    %c0_17 = arith.constant 0 : index
    %21 = vector.load %arg4[%c0_16, %c0_17] : memref<16x512xf32, #tpu.memory_space<vmem>>, vector<16x512xf32>
    tpu.vector_store %arg4[%c0_16, %c0_17], %20 {strides = array<i32>} : memref<16x512xf32, #tpu.memory_space<vmem>>, vector<16x512xf32>,
    return
  }
  func.func @transform_0(%arg0: i32) -> (i32, i32, i32) {
    %c0_i32 = arith.constant 0 : i32
    %c0_i32_0 = arith.constant 0 : i32
    %c0_i32_1 = arith.constant 0 : i32
    return %c0_i32, %c0_i32_0, %arg0 : i32, i32, i32
  }
  func.func @transform_1(%arg0: i32) -> (i32, i32) {
    %c0_i32 = arith.constant 0 : i32
    %c0_i32_0 = arith.constant 0 : i32
    %c0_i32_1 = arith.constant 0 : i32
    return %c0_i32, %c0_i32_0 : i32, i32
  }
  func.func @transform_2(%arg0: i32) -> (i32, i32) {
    %c0_i32 = arith.constant 0 : i32
    %c0_i32_0 = arith.constant 0 : i32
    %c0_i32_1 = arith.constant 0 : i32
    return %c0_i32, %c0_i32_0 : i32, i32
  }
  func.func @transform_3(%arg0: i32) -> (i32, i32) {
    %c0_i32 = arith.constant 0 : i32
    %c0_i32_0 = arith.constant 0 : i32
    return %c0_i32, %arg0 : i32, i32
  }
}

module attributes {stable_mosaic.version = 11 : i64} {
  func.func @conv_relu_pool_kernel(%arg0: i32, %arg1: memref<4x400x128xf32, #tpu.memory_space<vmem>>, %arg2: memref<32x400xf32, #tpu.memory_space<vmem>>, %arg3: memref<32x1xf32, #tpu.memory_space<vmem>>, %arg4: memref<32x128xf32, #tpu.memory_space<vmem>>) attributes {dimension_semantics = [#tpu.dimension_semantics<parallel>], iteration_bounds = array<i64: 1>, scalar_prefetch = 0 : i64, scratch_operands = 0 : i64, tpu.core_type = #tpu.core_type<tc>, window_params = [{transform_indices = @transform_0, window_bounds = array<i64: 4, 400, 128>}, {pipeline_mode = #tpu.pipeline_mode<synchronous>, transform_indices = @transform_1, window_bounds = array<i64: 32, 400>}, {pipeline_mode = #tpu.pipeline_mode<synchronous>, transform_indices = @transform_2, window_bounds = array<i64: 32, 1>}, {transform_indices = @transform_3, window_bounds = array<i64: 32, 128>}]} {
    %c0 = arith.constant 0 : index
    %c0_0 = arith.constant 0 : index
    %0 = vector.load %arg2[%c0, %c0_0] : memref<32x400xf32, #tpu.memory_space<vmem>>, vector<32x400xf32>
    %c0_1 = arith.constant 0 : index
    %c0_2 = arith.constant 0 : index
    %c0_3 = arith.constant 0 : index
    %1 = vector.load %arg1[%c0_1, %c0_2, %c0_3] : memref<4x400x128xf32, #tpu.memory_space<vmem>>, vector<1x400x128xf32>
    %2 = vector.shape_cast %1 : vector<1x400x128xf32> to vector<400x128xf32>
    %cst = arith.constant dense<0.000000e+00> : vector<32x128xf32>
    %3 = tpu.matmul %0, %2, %cst {dimension_numbers = #tpu.dot_dimension_numbers<[1], [0], [0], [1], [0, 0, 1, 1], [], []>} : vector<32x400xf32>, vector<400x128xf32>, vector<32x128xf32> -> vector<32x128xf32>
    %c1 = arith.constant 1 : index
    %c0_4 = arith.constant 0 : index
    %c0_5 = arith.constant 0 : index
    %4 = vector.load %arg1[%c1, %c0_4, %c0_5] : memref<4x400x128xf32, #tpu.memory_space<vmem>>, vector<1x400x128xf32>
    %5 = vector.shape_cast %4 : vector<1x400x128xf32> to vector<400x128xf32>
    %cst_6 = arith.constant dense<0.000000e+00> : vector<32x128xf32>
    %6 = tpu.matmul %0, %5, %cst_6 {dimension_numbers = #tpu.dot_dimension_numbers<[1], [0], [0], [1], [0, 0, 1, 1], [], []>} : vector<32x400xf32>, vector<400x128xf32>, vector<32x128xf32> -> vector<32x128xf32>
    %c2 = arith.constant 2 : index
    %c0_7 = arith.constant 0 : index
    %c0_8 = arith.constant 0 : index
    %7 = vector.load %arg1[%c2, %c0_7, %c0_8] : memref<4x400x128xf32, #tpu.memory_space<vmem>>, vector<1x400x128xf32>
    %8 = vector.shape_cast %7 : vector<1x400x128xf32> to vector<400x128xf32>
    %cst_9 = arith.constant dense<0.000000e+00> : vector<32x128xf32>
    %9 = tpu.matmul %0, %8, %cst_9 {dimension_numbers = #tpu.dot_dimension_numbers<[1], [0], [0], [1], [0, 0, 1, 1], [], []>} : vector<32x400xf32>, vector<400x128xf32>, vector<32x128xf32> -> vector<32x128xf32>
    %c3 = arith.constant 3 : index
    %c0_10 = arith.constant 0 : index
    %c0_11 = arith.constant 0 : index
    %10 = vector.load %arg1[%c3, %c0_10, %c0_11] : memref<4x400x128xf32, #tpu.memory_space<vmem>>, vector<1x400x128xf32>
    %11 = vector.shape_cast %10 : vector<1x400x128xf32> to vector<400x128xf32>
    %cst_12 = arith.constant dense<0.000000e+00> : vector<32x128xf32>
    %12 = tpu.matmul %0, %11, %cst_12 {dimension_numbers = #tpu.dot_dimension_numbers<[1], [0], [0], [1], [0, 0, 1, 1], [], []>} : vector<32x400xf32>, vector<400x128xf32>, vector<32x128xf32> -> vector<32x128xf32>
    %13 = arith.maximumf %3, %6 : vector<32x128xf32>
    %14 = arith.maximumf %9, %12 : vector<32x128xf32>
    %15 = arith.maximumf %13, %14 : vector<32x128xf32>
    %c0_13 = arith.constant 0 : index
    %c0_14 = arith.constant 0 : index
    %16 = vector.load %arg3[%c0_13, %c0_14] : memref<32x1xf32, #tpu.memory_space<vmem>>, vector<32x1xf32>
    %17 = vector.broadcast %16 : vector<32x1xf32> to vector<32x128xf32>
    %18 = arith.addf %15, %17 : vector<32x128xf32>
    %cst_15 = arith.constant 0.000000e+00 : f32
    %19 = vector.broadcast %cst_15 : f32 to vector<32x128xf32>
    %20 = arith.maximumf %18, %19 : vector<32x128xf32>
    %c0_16 = arith.constant 0 : index
    %c0_17 = arith.constant 0 : index
    %21 = vector.load %arg4[%c0_16, %c0_17] : memref<32x128xf32, #tpu.memory_space<vmem>>, vector<32x128xf32>
    tpu.vector_store %arg4[%c0_16, %c0_17], %20 {strides = array<i32>} : memref<32x128xf32, #tpu.memory_space<vmem>>, vector<32x128xf32>,
    return
  }
  func.func @transform_0(%arg0: i32) -> (i32, i32, i32) {
    %c0_i32 = arith.constant 0 : i32
    %c0_i32_0 = arith.constant 0 : i32
    %c0_i32_1 = arith.constant 0 : i32
    return %c0_i32, %c0_i32_0, %arg0 : i32, i32, i32
  }
  func.func @transform_1(%arg0: i32) -> (i32, i32) {
    %c0_i32 = arith.constant 0 : i32
    %c0_i32_0 = arith.constant 0 : i32
    %c0_i32_1 = arith.constant 0 : i32
    return %c0_i32, %c0_i32_0 : i32, i32
  }
  func.func @transform_2(%arg0: i32) -> (i32, i32) {
    %c0_i32 = arith.constant 0 : i32
    %c0_i32_0 = arith.constant 0 : i32
    %c0_i32_1 = arith.constant 0 : i32
    return %c0_i32, %c0_i32_0 : i32, i32
  }
  func.func @transform_3(%arg0: i32) -> (i32, i32) {
    %c0_i32 = arith.constant 0 : i32
    %c0_i32_0 = arith.constant 0 : i32
    return %c0_i32, %arg0 : i32, i32
  }
}

module attributes {stable_mosaic.version = 11 : i64} {
  func.func @linear_kernel(%arg0: i32, %arg1: memref<2x1568xf32, #tpu.memory_space<vmem>>, %arg2: memref<1568x10xf32, #tpu.memory_space<vmem>>, %arg3: memref<1x10xf32, #tpu.memory_space<vmem>>, %arg4: memref<2x10xf32, #tpu.memory_space<vmem>>) attributes {dimension_semantics = [#tpu.dimension_semantics<arbitrary>], iteration_bounds = array<i64: 1>, scalar_prefetch = 0 : i64, scratch_operands = 0 : i64, tpu.core_type = #tpu.core_type<tc>, window_params = [{pipeline_mode = #tpu.pipeline_mode<synchronous>, transform_indices = @transform_0, window_bounds = array<i64: 2, 1568>}, {pipeline_mode = #tpu.pipeline_mode<synchronous>, transform_indices = @transform_1, window_bounds = array<i64: 1568, 10>}, {pipeline_mode = #tpu.pipeline_mode<synchronous>, transform_indices = @transform_2, window_bounds = array<i64: 1, 10>}, {pipeline_mode = #tpu.pipeline_mode<synchronous>, transform_indices = @transform_3, window_bounds = array<i64: 2, 10>}]} {
    %c0 = arith.constant 0 : index
    %c0_0 = arith.constant 0 : index
    %0 = vector.load %arg1[%c0, %c0_0] : memref<2x1568xf32, #tpu.memory_space<vmem>>, vector<2x1568xf32>
    %c0_1 = arith.constant 0 : index
    %c0_2 = arith.constant 0 : index
    %1 = vector.load %arg2[%c0_1, %c0_2] : memref<1568x10xf32, #tpu.memory_space<vmem>>, vector<1568x10xf32>
    %cst = arith.constant dense<0.000000e+00> : vector<2x10xf32>
    %2 = tpu.matmul %0, %1, %cst {dimension_numbers = #tpu.dot_dimension_numbers<[1], [0], [0], [1], [0, 0, 1, 1], [], []>} : vector<2x1568xf32>, vector<1568x10xf32>, vector<2x10xf32> -> vector<2x10xf32>
    %c0_3 = arith.constant 0 : index
    %c0_4 = arith.constant 0 : index
    %3 = vector.load %arg3[%c0_3, %c0_4] : memref<1x10xf32, #tpu.memory_space<vmem>>, vector<1x10xf32>
    %4 = vector.broadcast %3 : vector<1x10xf32> to vector<2x10xf32>
    %5 = arith.addf %2, %4 : vector<2x10xf32>
    %c0_5 = arith.constant 0 : index
    %c0_6 = arith.constant 0 : index
    %6 = vector.load %arg4[%c0_5, %c0_6] : memref<2x10xf32, #tpu.memory_space<vmem>>, vector<2x10xf32>
    tpu.vector_store %arg4[%c0_5, %c0_6], %5 {strides = array<i32>} : memref<2x10xf32, #tpu.memory_space<vmem>>, vector<2x10xf32>,
    return
  }
  func.func @transform_0(%arg0: i32) -> (i32, i32) {
    %c0_i32 = arith.constant 0 : i32
    %c0_i32_0 = arith.constant 0 : i32
    %c0_i32_1 = arith.constant 0 : i32
    return %c0_i32, %c0_i32_0 : i32, i32
  }
  func.func @transform_1(%arg0: i32) -> (i32, i32) {
    %c0_i32 = arith.constant 0 : i32
    %c0_i32_0 = arith.constant 0 : i32
    %c0_i32_1 = arith.constant 0 : i32
    return %c0_i32, %c0_i32_0 : i32, i32
  }
  func.func @transform_2(%arg0: i32) -> (i32, i32) {
    %c0_i32 = arith.constant 0 : i32
    %c0_i32_0 = arith.constant 0 : i32
    %c0_i32_1 = arith.constant 0 : i32
    return %c0_i32, %c0_i32_0 : i32, i32
  }
  func.func @transform_3(%arg0: i32) -> (i32, i32) {
    %c0_i32 = arith.constant 0 : i32
    %c0_i32_0 = arith.constant 0 : i32
    %c0_i32_1 = arith.constant 0 : i32
    return %c0_i32, %c0_i32_0 : i32, i32
  }
}

</mosaic_0001>

<llo_original>
// kernel: cnn_forward.3
$region0: #{cnn_forward.3}
  #allocation0 [shape = 'u32[]', space=smem, size = 0x4, offset = 0x4, fixed_abs, tag = 'smem constant byte address 0x4 - core index']
  #allocation1 [shape = 'u32[72,128]{1,0:T(1,128)}', space=vmem, size = 0x9000, scoped, tag = 'internal scratch']
  %s0 = inlined_call_operand.vmem [shape: f32[4,75,512], index: 0, kind: input, shape index: {}]
  %s1 = inlined_call_operand.vmem [shape: f32[16,75], index: 1, kind: input, shape index: {}]
  %s2 = inlined_call_operand.vmem [shape: f32[16,1], index: 2, kind: input, shape index: {}]
  %s3 = inlined_call_operand.vmem [shape: f32[16,512], index: 3, kind: output, shape index: {}]
  %s4 = sld [smem:[#allocation0]]
  $region22: #{cnn_forward.3} parent=0
    _
  %s6 = ssub.s32 1, %s4
  %s7 = scalar_select 0, %s6, %s4
  // Predicated region
  $region2: #{cnn_forward.3} parent=0 // pred_check
    _
  $region3: #{cnn_forward.3} parent=0 // pred_check_branch
    %9 = sbr.rel (0) target = $region5
  $region4: #{cnn_forward.3} parent=0 // pred_region
    _
  $region5: #{cnn_forward.3} parent=0 // pred_fallthru
    _
  // Predicated region
  $region6: #{cnn_forward.3} parent=0 // pred_check
    _
  $region7: #{cnn_forward.3} parent=0 // pred_check_branch
    %11 = sbr.rel (0) target = $region9
  $region8: #{cnn_forward.3} parent=0 // pred_region
    _
  $region9: #{cnn_forward.3} parent=0 // pred_fallthru
    _
  // Predicated region
  $region10: #{cnn_forward.3} parent=0 // pred_check
    _
  $region11: #{cnn_forward.3} parent=0 // pred_check_branch
    %13 = sbr.rel (0) target = $region13
  $region12: #{cnn_forward.3} parent=0 // pred_region
    _
  $region13: #{cnn_forward.3} parent=0 // pred_fallthru
    _
  %v14 = vld [vmem:[%s1] sm:$0xff]
  %v15 = vld [vmem:[%s1 + $0x8] sm:$0xff]
  %v16 = vld [vmem:[%s0] sm:$0xff]
  %v17 = vld [vmem:[%s0 + $0x8] sm:$0xff]
  %v18 = vld [vmem:[%s0 + $0x10] sm:$0xff]
  %v19 = vld [vmem:[%s0 + $0x18] sm:$0xff]
  %v20 = vld [vmem:[%s0 + $0x20] sm:$0xff]
  %v21 = vld [vmem:[%s0 + $0x28] sm:$0xff]
  %v22 = vld [vmem:[%s0 + $0x30] sm:$0xff]
  %v23 = vld [vmem:[%s0 + $0x38] sm:$0xff]
  %v24 = vld [vmem:[%s0 + $0x40] sm:$0xff]
  %v25 = vld [vmem:[%s0 + $0x48] sm:$0xff]
  %v26 = vld [vmem:[%s0 + $0x50] sm:$0xff]
  %v27 = vld [vmem:[%s0 + $0x58] sm:$0xff]
  %v28 = vld [vmem:[%s0 + $0x60] sm:$0xff]
  %v29 = vld [vmem:[%s0 + $0x68] sm:$0xff]
  %v30 = vld [vmem:[%s0 + $0x70] sm:$0xff]
  %v31 = vld [vmem:[%s0 + $0x78] sm:$0xff]
  %v32 = vld [vmem:[%s0 + $0x80] sm:$0xff]
  %v33 = vld [vmem:[%s0 + $0x88] sm:$0xff]
  %v34 = vld [vmem:[%s0 + $0x90] sm:$0xff]
  %v35 = vld [vmem:[%s0 + $0x98] sm:$0xff]
  %v36 = vld [vmem:[%s0 + $0xa0] sm:$0xff]
  %v37 = vld [vmem:[%s0 + $0xa8] sm:$0xff]
  %v38 = vld [vmem:[%s0 + $0xb0] sm:$0xff]
  %v39 = vld [vmem:[%s0 + $0xb8] sm:$0xff]
  %v40 = vld [vmem:[%s0 + $0xc0] sm:$0xff]
  %v41 = vld [vmem:[%s0 + $0xc8] sm:$0xff]
  %v42 = vld [vmem:[%s0 + $0xd0] sm:$0xff]
  %v43 = vld [vmem:[%s0 + $0xd8] sm:$0xff]
  %v44 = vld [vmem:[%s0 + $0xe0] sm:$0xff]
  %v45 = vld [vmem:[%s0 + $0xe8] sm:$0xff]
  %v46 = vld [vmem:[%s0 + $0xf0] sm:$0xff]
  %v47 = vld [vmem:[%s0 + $0xf8] sm:$0xff]
  %v48 = vld [vmem:[%s0 + $0x100] sm:$0xff]
  %v49 = vld [vmem:[%s0 + $0x108] sm:$0xff]
  %v50 = vld [vmem:[%s0 + $0x110] sm:$0xff]
  %v51 = vld [vmem:[%s0 + $0x118] sm:$0xff]
  %v52 = vld [vmem:[%s0 + $0x120] sm:$0x7]
  %v53 = vld [vmem:[%s0 + $0x128] sm:$0x7]
  %v54 = vld [vmem:[%s0 + $0x130] sm:$0x7]
  %v55 = vld [vmem:[%s0 + $0x138] sm:$0x7]
  %vm56 = vcmask 613376
  %v58 = vsel %vm56, %v14, 0
  %v61 = vsel %vm56, %v15, 0
  %vm63 = vcmask 1042432
  %v65 = vsel %vm63, %v52, 0
  %v68 = vsel %vm63, %v53, 0
  %v71 = vsel %vm63, %v54, 0
  %v74 = vsel %vm63, %v55, 0
  %76 = vmatpush.msra.mxu0 0.0
  %77 = vmatpush.msra.mxu0 0.0
  %78 = vmatpush.msra.mxu0 0.0
  %79 = vmatpush.msra.mxu0 0.0
  %80 = vmatpush.msra.mxu0 0.0
  %81 = vmatpush.msra.mxu0 0.0
  %82 = vmatpush.msra.mxu0 %v65
  %83 = vmatpush.msra.mxu0 %v48
  %84 = vmatpush.msra.mxu0 %v44
  %85 = vmatpush.msra.mxu0 %v40
  %86 = vmatpush.msra.mxu0 %v36
  %87 = vmatpush.msra.mxu0 %v32
  %88 = vmatpush.msra.mxu0 %v28
  %89 = vmatpush.msra.mxu0 %v24
  %90 = vmatpush.msra.mxu0 %v20
  %91 = vmatpush.msra.mxu0 %v16
  %92 = vmatmul.f32.gmra.mxu0 %v58
  %v93 = vpop.f32.mrf.mxu0
  %v94 = vadd.f32 0.0, %v93
  %95 = vmatmul.f32.gmra.mxu0 %v61
  %v96 = vpop.f32.mrf.mxu0
  %v97 = vadd.f32 0.0, %v96
  %98 = vdwg.mxu0
  %99 = vmatpush.msra.mxu0 0.0
  %100 = vmatpush.msra.mxu0 0.0
  %101 = vmatpush.msra.mxu0 0.0
  %102 = vmatpush.msra.mxu0 0.0
  %103 = vmatpush.msra.mxu0 0.0
  %104 = vmatpush.msra.mxu0 0.0
  %105 = vmatpush.msra.mxu0 %v68
  %106 = vmatpush.msra.mxu0 %v49
  %107 = vmatpush.msra.mxu0 %v45
  %108 = vmatpush.msra.mxu0 %v41
  %109 = vmatpush.msra.mxu0 %v37
  %110 = vmatpush.msra.mxu0 %v33
  %111 = vmatpush.msra.mxu0 %v29
  %112 = vmatpush.msra.mxu0 %v25
  %113 = vmatpush.msra.mxu0 %v21
  %114 = vmatpush.msra.mxu0 %v17
  %115 = vmatmul.f32.gmra.mxu0 %v58
  %v116 = vpop.f32.mrf.mxu0
  %v117 = vadd.f32 0.0, %v116
  %118 = vmatmul.f32.gmra.mxu0 %v61
  %v119 = vpop.f32.mrf.mxu0
  %v120 = vadd.f32 0.0, %v119
  %121 = vdwg.mxu0
  %122 = vmatpush.msra.mxu0 0.0
  %123 = vmatpush.msra.mxu0 0.0
  %124 = vmatpush.msra.mxu0 0.0
  %125 = vmatpush.msra.mxu0 0.0
  %126 = vmatpush.msra.mxu0 0.0
  %127 = vmatpush.msra.mxu0 0.0
  %128 = vmatpush.msra.mxu0 %v71
  %129 = vmatpush.msra.mxu0 %v50
  %130 = vmatpush.msra.mxu0 %v46
  %131 = vmatpush.msra.mxu0 %v42
  %132 = vmatpush.msra.mxu0 %v38
  %133 = vmatpush.msra.mxu0 %v34
  %134 = vmatpush.msra.mxu0 %v30
  %135 = vmatpush.msra.mxu0 %v26
  %136 = vmatpush.msra.mxu0 %v22
  %137 = vmatpush.msra.mxu0 %v18
  %138 = vmatmul.f32.gmra.mxu0 %v58
  %v139 = vpop.f32.mrf.mxu0
  %v140 = vadd.f32 0.0, %v139
  %141 = vmatmul.f32.gmra.mxu0 %v61
  %v142 = vpop.f32.mrf.mxu0
  %v143 = vadd.f32 0.0, %v142
  %144 = vdwg.mxu0
  %145 = vmatpush.msra.mxu0 0.0
  %146 = vmatpush.msra.mxu0 0.0
  %147 = vmatpush.msra.mxu0 0.0
  %148 = vmatpush.msra.mxu0 0.0
  %149 = vmatpush.msra.mxu0 0.0
  %150 = vmatpush.msra.mxu0 0.0
  %151 = vmatpush.msra.mxu0 %v74
  %152 = vmatpush.msra.mxu0 %v51
  %153 = vmatpush.msra.mxu0 %v47
  %154 = vmatpush.msra.mxu0 %v43
  %155 = vmatpush.msra.mxu0 %v39
  %156 = vmatpush.msra.mxu0 %v35
  %157 = vmatpush.msra.mxu0 %v31
  %158 = vmatpush.msra.mxu0 %v27
  %159 = vmatpush.msra.mxu0 %v23
  %160 = vmatpush.msra.mxu0 %v19
  %161 = vmatmul.f32.gmra.mxu0 %v58
  %v162 = vpop.f32.mrf.mxu0
  %v163 = vadd.f32 0.0, %v162
  %164 = vmatmul.f32.gmra.mxu0 %v61
  %v165 = vpop.f32.mrf.mxu0
  %v166 = vadd.f32 0.0, %v165
  %167 = vdwg.mxu0
  %s168 = scalar_lea.vmem %s0, 320
  %v169 = vld [vmem:[%s168] sm:$0xff]
  %v170 = vld [vmem:[%s168 + $0x8] sm:$0xff]
  %v171 = vld [vmem:[%s168 + $0x10] sm:$0xff]
  %v172 = vld [vmem:[%s168 + $0x18] sm:$0xff]
  %v173 = vld [vmem:[%s168 + $0x20] sm:$0xff]
  %v174 = vld [vmem:[%s168 + $0x28] sm:$0xff]
  %v175 = vld [vmem:[%s168 + $0x30] sm:$0xff]
  %v176 = vld [vmem:[%s168 + $0x38] sm:$0xff]
  %v177 = vld [vmem:[%s168 + $0x40] sm:$0xff]
  %v178 = vld [vmem:[%s168 + $0x48] sm:$0xff]
  %v179 = vld [vmem:[%s168 + $0x50] sm:$0xff]
  %v180 = vld [vmem:[%s168 + $0x58] sm:$0xff]
  %v181 = vld [vmem:[%s168 + $0x60] sm:$0xff]
  %v182 = vld [vmem:[%s168 + $0x68] sm:$0xff]
  %v183 = vld [vmem:[%s168 + $0x70] sm:$0xff]
  %v184 = vld [vmem:[%s168 + $0x78] sm:$0xff]
  %v185 = vld [vmem:[%s168 + $0x80] sm:$0xff]
  %v186 = vld [vmem:[%s168 + $0x88] sm:$0xff]
  %v187 = vld [vmem:[%s168 + $0x90] sm:$0xff]
  %v188 = vld [vmem:[%s168 + $0x98] sm:$0xff]
  %v189 = vld [vmem:[%s168 + $0xa0] sm:$0xff]
  %v190 = vld [vmem:[%s168 + $0xa8] sm:$0xff]
  %v191 = vld [vmem:[%s168 + $0xb0] sm:$0xff]
  %v192 = vld [vmem:[%s168 + $0xb8] sm:$0xff]
  %v193 = vld [vmem:[%s168 + $0xc0] sm:$0xff]
  %v194 = vld [vmem:[%s168 + $0xc8] sm:$0xff]
  %v195 = vld [vmem:[%s168 + $0xd0] sm:$0xff]
  %v196 = vld [vmem:[%s168 + $0xd8] sm:$0xff]
  %v197 = vld [vmem:[%s168 + $0xe0] sm:$0xff]
  %v198 = vld [vmem:[%s168 + $0xe8] sm:$0xff]
  %v199 = vld [vmem:[%s168 + $0xf0] sm:$0xff]
  %v200 = vld [vmem:[%s168 + $0xf8] sm:$0xff]
  %v201 = vld [vmem:[%s168 + $0x100] sm:$0xff]
  %v202 = vld [vmem:[%s168 + $0x108] sm:$0xff]
  %v203 = vld [vmem:[%s168 + $0x110] sm:$0xff]
  %v204 = vld [vmem:[%s168 + $0x118] sm:$0xff]
  %v205 = vld [vmem:[%s168 + $0x120] sm:$0x7]
  %v206 = vld [vmem:[%s168 + $0x128] sm:$0x7]
  %v207 = vld [vmem:[%s168 + $0x130] sm:$0x7]
  %v208 = vld [vmem:[%s168 + $0x138] sm:$0x7]
  %v210 = vsel %vm63, %v205, 0
  %v213 = vsel %vm63, %v206, 0
  %v216 = vsel %vm63, %v207, 0
  %v219 = vsel %vm63, %v208, 0
  %221 = vmatpush.msra.mxu0 0.0
  %222 = vmatpush.msra.mxu0 0.0
  %223 = vmatpush.msra.mxu0 0.0
  %224 = vmatpush.msra.mxu0 0.0
  %225 = vmatpush.msra.mxu0 0.0
  %226 = vmatpush.msra.mxu0 0.0
  %227 = vmatpush.msra.mxu0 %v210
  %228 = vmatpush.msra.mxu0 %v201
  %229 = vmatpush.msra.mxu0 %v197
  %230 = vmatpush.msra.mxu0 %v193
  %231 = vmatpush.msra.mxu0 %v189
  %232 = vmatpush.msra.mxu0 %v185
  %233 = vmatpush.msra.mxu0 %v181
  %234 = vmatpush.msra.mxu0 %v177
  %235 = vmatpush.msra.mxu0 %v173
  %236 = vmatpush.msra.mxu0 %v169
  %237 = vmatmul.f32.gmra.mxu0 %v58
  %v238 = vpop.f32.mrf.mxu0
  %v239 = vadd.f32 0.0, %v238
  %240 = vmatmul.f32.gmra.mxu0 %v61
  %v241 = vpop.f32.mrf.mxu0
  %v242 = vadd.f32 0.0, %v241
  %243 = vdwg.mxu0
  %244 = vmatpush.msra.mxu0 0.0
  %245 = vmatpush.msra.mxu0 0.0
  %246 = vmatpush.msra.mxu0 0.0
  %247 = vmatpush.msra.mxu0 0.0
  %248 = vmatpush.msra.mxu0 0.0
  %249 = vmatpush.msra.mxu0 0.0
  %250 = vmatpush.msra.mxu0 %v213
  %251 = vmatpush.msra.mxu0 %v202
  %252 = vmatpush.msra.mxu0 %v198
  %253 = vmatpush.msra.mxu0 %v194
  %254 = vmatpush.msra.mxu0 %v190
  %255 = vmatpush.msra.mxu0 %v186
  %256 = vmatpush.msra.mxu0 %v182
  %257 = vmatpush.msra.mxu0 %v178
  %258 = vmatpush.msra.mxu0 %v174
  %259 = vmatpush.msra.mxu0 %v170
  %260 = vmatmul.f32.gmra.mxu0 %v58
  %v261 = vpop.f32.mrf.mxu0
  %v262 = vadd.f32 0.0, %v261
  %263 = vmatmul.f32.gmra.mxu0 %v61
  %v264 = vpop.f32.mrf.mxu0
  %v265 = vadd.f32 0.0, %v264
  %266 = vdwg.mxu0
  %267 = vmatpush.msra.mxu0 0.0
  %268 = vmatpush.msra.mxu0 0.0
  %269 = vmatpush.msra.mxu0 0.0
  %270 = vmatpush.msra.mxu0 0.0
  %271 = vmatpush.msra.mxu0 0.0
  %272 = vmatpush.msra.mxu0 0.0
  %273 = vmatpush.msra.mxu0 %v216
  %274 = vmatpush.msra.mxu0 %v203
  %275 = vmatpush.msra.mxu0 %v199
  %276 = vmatpush.msra.mxu0 %v195
  %277 = vmatpush.msra.mxu0 %v191
  %278 = vmatpush.msra.mxu0 %v187
  %279 = vmatpush.msra.mxu0 %v183
  %280 = vmatpush.msra.mxu0 %v179
  %281 = vmatpush.msra.mxu0 %v175
  %282 = vmatpush.msra.mxu0 %v171
  %283 = vmatmul.f32.gmra.mxu0 %v58
  %v284 = vpop.f32.mrf.mxu0
  %v285 = vadd.f32 0.0, %v284
  %286 = vmatmul.f32.gmra.mxu0 %v61
  %v287 = vpop.f32.mrf.mxu0
  %v288 = vadd.f32 0.0, %v287
  %289 = vdwg.mxu0
  %290 = vmatpush.msra.mxu0 0.0
  %291 = vmatpush.msra.mxu0 0.0
  %292 = vmatpush.msra.mxu0 0.0
  %293 = vmatpush.msra.mxu0 0.0
  %294 = vmatpush.msra.mxu0 0.0
  %295 = vmatpush.msra.mxu0 0.0
  %296 = vmatpush.msra.mxu0 %v219
  %297 = vmatpush.msra.mxu0 %v204
  %298 = vmatpush.msra.mxu0 %v200
  %299 = vmatpush.msra.mxu0 %v196
  %300 = vmatpush.msra.mxu0 %v192
  %301 = vmatpush.msra.mxu0 %v188
  %302 = vmatpush.msra.mxu0 %v184
  %303 = vmatpush.msra.mxu0 %v180
  %304 = vmatpush.msra.mxu0 %v176
  %305 = vmatpush.msra.mxu0 %v172
  %306 = vmatmul.f32.gmra.mxu0 %v58
  %v307 = vpop.f32.mrf.mxu0
  %v308 = vadd.f32 0.0, %v307
  %309 = vmatmul.f32.gmra.mxu0 %v61
  %v310 = vpop.f32.mrf.mxu0
  %v311 = vadd.f32 0.0, %v310
  %312 = vdwg.mxu0
  %s313 = scalar_lea.vmem %s0, 640
  %v314 = vld [vmem:[%s313] sm:$0xff]
  %v315 = vld [vmem:[%s313 + $0x8] sm:$0xff]
  %v316 = vld [vmem:[%s313 + $0x10] sm:$0xff]
  %v317 = vld [vmem:[%s313 + $0x18] sm:$0xff]
  %v318 = vld [vmem:[%s313 + $0x20] sm:$0xff]
  %v319 = vld [vmem:[%s313 + $0x28] sm:$0xff]
  %v320 = vld [vmem:[%s313 + $0x30] sm:$0xff]
  %v321 = vld [vmem:[%s313 + $0x38] sm:$0xff]
  %v322 = vld [vmem:[%s313 + $0x40] sm:$0xff]
  %v323 = vld [vmem:[%s313 + $0x48] sm:$0xff]
  %v324 = vld [vmem:[%s313 + $0x50] sm:$0xff]
  %v325 = vld [vmem:[%s313 + $0x58] sm:$0xff]
  %v326 = vld [vmem:[%s313 + $0x60] sm:$0xff]
  %v327 = vld [vmem:[%s313 + $0x68] sm:$0xff]
  %v328 = vld [vmem:[%s313 + $0x70] sm:$0xff]
  %v329 = vld [vmem:[%s313 + $0x78] sm:$0xff]
  %v330 = vld [vmem:[%s313 + $0x80] sm:$0xff]
  %v331 = vld [vmem:[%s313 + $0x88] sm:$0xff]
  %v332 = vld [vmem:[%s313 + $0x90] sm:$0xff]
  %v333 = vld [vmem:[%s313 + $0x98] sm:$0xff]
  %v334 = vld [vmem:[%s313 + $0xa0] sm:$0xff]
  %v335 = vld [vmem:[%s313 + $0xa8] sm:$0xff]
  %v336 = vld [vmem:[%s313 + $0xb0] sm:$0xff]
  %v337 = vld [vmem:[%s313 + $0xb8] sm:$0xff]
  %v338 = vld [vmem:[%s313 + $0xc0] sm:$0xff]
  %v339 = vld [vmem:[%s313 + $0xc8] sm:$0xff]
  %v340 = vld [vmem:[%s313 + $0xd0] sm:$0xff]
  %v341 = vld [vmem:[%s313 + $0xd8] sm:$0xff]
  %v342 = vld [vmem:[%s313 + $0xe0] sm:$0xff]
  %v343 = vld [vmem:[%s313 + $0xe8] sm:$0xff]
  %v344 = vld [vmem:[%s313 + $0xf0] sm:$0xff]
  %v345 = vld [vmem:[%s313 + $0xf8] sm:$0xff]
  %v346 = vld [vmem:[%s313 + $0x100] sm:$0xff]
  %v347 = vld [vmem:[%s313 + $0x108] sm:$0xff]
  %v348 = vld [vmem:[%s313 + $0x110] sm:$0xff]
  %v349 = vld [vmem:[%s313 + $0x118] sm:$0xff]
  %v350 = vld [vmem:[%s313 + $0x120] sm:$0x7]
  %v351 = vld [vmem:[%s313 + $0x128] sm:$0x7]
  %v352 = vld [vmem:[%s313 + $0x130] sm:$0x7]
  %v353 = vld [vmem:[%s313 + $0x138] sm:$0x7]
  %v355 = vsel %vm63, %v350, 0
  %v358 = vsel %vm63, %v351, 0
  %v361 = vsel %vm63, %v352, 0
  %v364 = vsel %vm63, %v353, 0
  %366 = vmatpush.msra.mxu0 0.0
  %367 = vmatpush.msra.mxu0 0.0
  %368 = vmatpush.msra.mxu0 0.0
  %369 = vmatpush.msra.mxu0 0.0
  %370 = vmatpush.msra.mxu0 0.0
  %371 = vmatpush.msra.mxu0 0.0
  %372 = vmatpush.msra.mxu0 %v355
  %373 = vmatpush.msra.mxu0 %v346
  %374 = vmatpush.msra.mxu0 %v342
  %375 = vmatpush.msra.mxu0 %v338
  %376 = vmatpush.msra.mxu0 %v334
  %377 = vmatpush.msra.mxu0 %v330
  %378 = vmatpush.msra.mxu0 %v326
  %379 = vmatpush.msra.mxu0 %v322
  %380 = vmatpush.msra.mxu0 %v318
  %381 = vmatpush.msra.mxu0 %v314
  %382 = vmatmul.f32.gmra.mxu0 %v58
  %v383 = vpop.f32.mrf.mxu0
  %v384 = vadd.f32 0.0, %v383
  %385 = vmatmul.f32.gmra.mxu0 %v61
  %v386 = vpop.f32.mrf.mxu0
  %v387 = vadd.f32 0.0, %v386
  %388 = vdwg.mxu0
  %389 = vmatpush.msra.mxu0 0.0
  %390 = vmatpush.msra.mxu0 0.0
  %391 = vmatpush.msra.mxu0 0.0
  %392 = vmatpush.msra.mxu0 0.0
  %393 = vmatpush.msra.mxu0 0.0
  %394 = vmatpush.msra.mxu0 0.0
  %395 = vmatpush.msra.mxu0 %v358
  %396 = vmatpush.msra.mxu0 %v347
  %397 = vmatpush.msra.mxu0 %v343
  %398 = vmatpush.msra.mxu0 %v339
  %399 = vmatpush.msra.mxu0 %v335
  %400 = vmatpush.msra.mxu0 %v331
  %401 = vmatpush.msra.mxu0 %v327
  %402 = vmatpush.msra.mxu0 %v323
  %403 = vmatpush.msra.mxu0 %v319
  %404 = vmatpush.msra.mxu0 %v315
  %405 = vmatmul.f32.gmra.mxu0 %v58
  %v406 = vpop.f32.mrf.mxu0
  %v407 = vadd.f32 0.0, %v406
  %408 = vmatmul.f32.gmra.mxu0 %v61
  %v409 = vpop.f32.mrf.mxu0
  %v410 = vadd.f32 0.0, %v409
  %411 = vdwg.mxu0
  %412 = vmatpush.msra.mxu0 0.0
  %413 = vmatpush.msra.mxu0 0.0
  %414 = vmatpush.msra.mxu0 0.0
  %415 = vmatpush.msra.mxu0 0.0
  %416 = vmatpush.msra.mxu0 0.0
  %417 = vmatpush.msra.mxu0 0.0
  %418 = vmatpush.msra.mxu0 %v361
  %419 = vmatpush.msra.mxu0 %v348
  %420 = vmatpush.msra.mxu0 %v344
  %421 = vmatpush.msra.mxu0 %v340
  %422 = vmatpush.msra.mxu0 %v336
  %423 = vmatpush.msra.mxu0 %v332
  %424 = vmatpush.msra.mxu0 %v328
  %425 = vmatpush.msra.mxu0 %v324
  %426 = vmatpush.msra.mxu0 %v320
  %427 = vmatpush.msra.mxu0 %v316
  %428 = vmatmul.f32.gmra.mxu0 %v58
  %v429 = vpop.f32.mrf.mxu0
  %v430 = vadd.f32 0.0, %v429
  %431 = vmatmul.f32.gmra.mxu0 %v61
  %v432 = vpop.f32.mrf.mxu0
  %v433 = vadd.f32 0.0, %v432
  %434 = vdwg.mxu0
  %435 = vmatpush.msra.mxu0 0.0
  %436 = vmatpush.msra.mxu0 0.0
  %437 = vmatpush.msra.mxu0 0.0
  %438 = vmatpush.msra.mxu0 0.0
  %439 = vmatpush.msra.mxu0 0.0
  %440 = vmatpush.msra.mxu0 0.0
  %441 = vmatpush.msra.mxu0 %v364
  %442 = vmatpush.msra.mxu0 %v349
  %443 = vmatpush.msra.mxu0 %v345
  %444 = vmatpush.msra.mxu0 %v341
  %445 = vmatpush.msra.mxu0 %v337
  %446 = vmatpush.msra.mxu0 %v333
  %447 = vmatpush.msra.mxu0 %v329
  %448 = vmatpush.msra.mxu0 %v325
  %449 = vmatpush.msra.mxu0 %v321
  %450 = vmatpush.msra.mxu0 %v317
  %451 = vmatmul.f32.gmra.mxu0 %v58
  %v452 = vpop.f32.mrf.mxu0
  %v453 = vadd.f32 0.0, %v452
  %454 = vmatmul.f32.gmra.mxu0 %v61
  %v455 = vpop.f32.mrf.mxu0
  %v456 = vadd.f32 0.0, %v455
  %457 = vdwg.mxu0
  %s458 = scalar_lea.vmem %s0, 960
  %v459 = vld [vmem:[%s458] sm:$0xff]
  %v460 = vld [vmem:[%s458 + $0x8] sm:$0xff]
  %v461 = vld [vmem:[%s458 + $0x10] sm:$0xff]
  %v462 = vld [vmem:[%s458 + $0x18] sm:$0xff]
  %v463 = vld [vmem:[%s458 + $0x20] sm:$0xff]
  %v464 = vld [vmem:[%s458 + $0x28] sm:$0xff]
  %v465 = vld [vmem:[%s458 + $0x30] sm:$0xff]
  %v466 = vld [vmem:[%s458 + $0x38] sm:$0xff]
  %v467 = vld [vmem:[%s458 + $0x40] sm:$0xff]
  %v468 = vld [vmem:[%s458 + $0x48] sm:$0xff]
  %v469 = vld [vmem:[%s458 + $0x50] sm:$0xff]
  %v470 = vld [vmem:[%s458 + $0x58] sm:$0xff]
  %v471 = vld [vmem:[%s458 + $0x60] sm:$0xff]
  %v472 = vld [vmem:[%s458 + $0x68] sm:$0xff]
  %v473 = vld [vmem:[%s458 + $0x70] sm:$0xff]
  %v474 = vld [vmem:[%s458 + $0x78] sm:$0xff]
  %v475 = vld [vmem:[%s458 + $0x80] sm:$0xff]
  %v476 = vld [vmem:[%s458 + $0x88] sm:$0xff]
  %v477 = vld [vmem:[%s458 + $0x90] sm:$0xff]
  %v478 = vld [vmem:[%s458 + $0x98] sm:$0xff]
  %v479 = vld [vmem:[%s458 + $0xa0] sm:$0xff]
  %v480 = vld [vmem:[%s458 + $0xa8] sm:$0xff]
  %v481 = vld [vmem:[%s458 + $0xb0] sm:$0xff]
  %v482 = vld [vmem:[%s458 + $0xb8] sm:$0xff]
  %v483 = vld [vmem:[%s458 + $0xc0] sm:$0xff]
  %v484 = vld [vmem:[%s458 + $0xc8] sm:$0xff]
  %v485 = vld [vmem:[%s458 + $0xd0] sm:$0xff]
  %v486 = vld [vmem:[%s458 + $0xd8] sm:$0xff]
  %v487 = vld [vmem:[%s458 + $0xe0] sm:$0xff]
  %v488 = vld [vmem:[%s458 + $0xe8] sm:$0xff]
  %v489 = vld [vmem:[%s458 + $0xf0] sm:$0xff]
  %v490 = vld [vmem:[%s458 + $0xf8] sm:$0xff]
  %v491 = vld [vmem:[%s458 + $0x100] sm:$0xff]
  %v492 = vld [vmem:[%s458 + $0x108] sm:$0xff]
  %v493 = vld [vmem:[%s458 + $0x110] sm:$0xff]
  %v494 = vld [vmem:[%s458 + $0x118] sm:$0xff]
  %v495 = vld [vmem:[%s458 + $0x120] sm:$0x7]
  %v496 = vld [vmem:[%s458 + $0x128] sm:$0x7]
  %v497 = vld [vmem:[%s458 + $0x130] sm:$0x7]
  %v498 = vld [vmem:[%s458 + $0x138] sm:$0x7]
  %v500 = vsel %vm63, %v495, 0
  %v503 = vsel %vm63, %v496, 0
  %v506 = vsel %vm63, %v497, 0
  %v509 = vsel %vm63, %v498, 0
  %511 = vmatpush.msra.mxu0 0.0
  %512 = vmatpush.msra.mxu0 0.0
  %513 = vmatpush.msra.mxu0 0.0
  %514 = vmatpush.msra.mxu0 0.0
  %515 = vmatpush.msra.mxu0 0.0
  %516 = vmatpush.msra.mxu0 0.0
  %517 = vmatpush.msra.mxu0 %v500
  %518 = vmatpush.msra.mxu0 %v491
  %519 = vmatpush.msra.mxu0 %v487
  %520 = vmatpush.msra.mxu0 %v483
  %521 = vmatpush.msra.mxu0 %v479
  %522 = vmatpush.msra.mxu0 %v475
  %523 = vmatpush.msra.mxu0 %v471
  %524 = vmatpush.msra.mxu0 %v467
  %525 = vmatpush.msra.mxu0 %v463
  %526 = vmatpush.msra.mxu0 %v459
  %527 = vmatmul.f32.gmra.mxu0 %v58
  %v528 = vpop.f32.mrf.mxu0
  %v529 = vadd.f32 0.0, %v528
  %530 = vmatmul.f32.gmra.mxu0 %v61
  %v531 = vpop.f32.mrf.mxu0
  %v532 = vadd.f32 0.0, %v531
  %533 = vdwg.mxu0
  %534 = vmatpush.msra.mxu0 0.0
  %535 = vmatpush.msra.mxu0 0.0
  %536 = vmatpush.msra.mxu0 0.0
  %537 = vmatpush.msra.mxu0 0.0
  %538 = vmatpush.msra.mxu0 0.0
  %539 = vmatpush.msra.mxu0 0.0
  %540 = vmatpush.msra.mxu0 %v503
  %541 = vmatpush.msra.mxu0 %v492
  %542 = vmatpush.msra.mxu0 %v488
  %543 = vmatpush.msra.mxu0 %v484
  %544 = vmatpush.msra.mxu0 %v480
  %545 = vmatpush.msra.mxu0 %v476
  %546 = vmatpush.msra.mxu0 %v472
  %547 = vmatpush.msra.mxu0 %v468
  %548 = vmatpush.msra.mxu0 %v464
  %549 = vmatpush.msra.mxu0 %v460
  %550 = vmatmul.f32.gmra.mxu0 %v58
  %v551 = vpop.f32.mrf.mxu0
  %v552 = vadd.f32 0.0, %v551
  %553 = vmatmul.f32.gmra.mxu0 %v61
  %v554 = vpop.f32.mrf.mxu0
  %v555 = vadd.f32 0.0, %v554
  %556 = vdwg.mxu0
  %557 = vmatpush.msra.mxu0 0.0
  %558 = vmatpush.msra.mxu0 0.0
  %559 = vmatpush.msra.mxu0 0.0
  %560 = vmatpush.msra.mxu0 0.0
  %561 = vmatpush.msra.mxu0 0.0
  %562 = vmatpush.msra.mxu0 0.0
  %563 = vmatpush.msra.mxu0 %v506
  %564 = vmatpush.msra.mxu0 %v493
  %565 = vmatpush.msra.mxu0 %v489
  %566 = vmatpush.msra.mxu0 %v485
  %567 = vmatpush.msra.mxu0 %v481
  %568 = vmatpush.msra.mxu0 %v477
  %569 = vmatpush.msra.mxu0 %v473
  %570 = vmatpush.msra.mxu0 %v469
  %571 = vmatpush.msra.mxu0 %v465
  %572 = vmatpush.msra.mxu0 %v461
  %573 = vmatmul.f32.gmra.mxu0 %v58
  %v574 = vpop.f32.mrf.mxu0
  %v575 = vadd.f32 0.0, %v574
  %576 = vmatmul.f32.gmra.mxu0 %v61
  %v577 = vpop.f32.mrf.mxu0
  %v578 = vadd.f32 0.0, %v577
  %579 = vdwg.mxu0
  %580 = vmatpush.msra.mxu0 0.0
  %581 = vmatpush.msra.mxu0 0.0
  %582 = vmatpush.msra.mxu0 0.0
  %583 = vmatpush.msra.mxu0 0.0
  %584 = vmatpush.msra.mxu0 0.0
  %585 = vmatpush.msra.mxu0 0.0
  %586 = vmatpush.msra.mxu0 %v509
  %587 = vmatpush.msra.mxu0 %v494
  %588 = vmatpush.msra.mxu0 %v490
  %589 = vmatpush.msra.mxu0 %v486
  %590 = vmatpush.msra.mxu0 %v482
  %591 = vmatpush.msra.mxu0 %v478
  %592 = vmatpush.msra.mxu0 %v474
  %593 = vmatpush.msra.mxu0 %v470
  %594 = vmatpush.msra.mxu0 %v466
  %595 = vmatpush.msra.mxu0 %v462
  %596 = vmatmul.f32.gmra.mxu0 %v58
  %v597 = vpop.f32.mrf.mxu0
  %v598 = vadd.f32 0.0, %v597
  %599 = vmatmul.f32.gmra.mxu0 %v61
  %v600 = vpop.f32.mrf.mxu0
  %v601 = vadd.f32 0.0, %v600
  %602 = vdwg.mxu0
  %v603 = vmax.f32 %v94, %v239
  %v604 = vmax.f32 %v117, %v262
  %v605 = vmax.f32 %v140, %v285
  %v606 = vmax.f32 %v163, %v308
  %v607 = vmax.f32 %v97, %v242
  %v608 = vmax.f32 %v120, %v265
  %v609 = vmax.f32 %v143, %v288
  %v610 = vmax.f32 %v166, %v311
  %v611 = vmax.f32 %v384, %v529
  %v612 = vmax.f32 %v407, %v552
  %v613 = vmax.f32 %v430, %v575
  %v614 = vmax.f32 %v453, %v598
  %v615 = vmax.f32 %v387, %v532
  %v616 = vmax.f32 %v410, %v555
  %v617 = vmax.f32 %v433, %v578
  %v618 = vmax.f32 %v456, %v601
  %v619 = vmax.f32 %v603, %v611
  %v620 = vmax.f32 %v604, %v612
  %v621 = vmax.f32 %v605, %v613
  %v622 = vmax.f32 %v606, %v614
  %v623 = vmax.f32 %v607, %v615
  %v624 = vmax.f32 %v608, %v616
  %v625 = vmax.f32 %v609, %v617
  %v626 = vmax.f32 %v610, %v618
  %v627 = vld [vmem:[%s2] sm:$0xff]
  %v628 = vld [vmem:[%s2 + $0x8] sm:$0xff]
  %630 = vset.pattern.permute.xlu0 0
  %631 = vperm.xlu0 %630, %v627
  %v632 = vpop.permute.xlu0 %631
  %635 = vset.pattern.permute.xlu0 0
  %636 = vperm.xlu0 %635, %v628
  %v637 = vpop.permute.xlu0 %636
  %v639 = vadd.f32 %v619, %v632
  %v640 = vadd.f32 %v620, %v632
  %v641 = vadd.f32 %v621, %v632
  %v642 = vadd.f32 %v622, %v632
  %v643 = vadd.f32 %v623, %v637
  %v644 = vadd.f32 %v624, %v637
  %v645 = vadd.f32 %v625, %v637
  %v646 = vadd.f32 %v626, %v637
  %v647 = vmax.f32 %v639, 0.0
  %v648 = vmax.f32 %v640, 0.0
  %v649 = vmax.f32 %v641, 0.0
  %v650 = vmax.f32 %v642, 0.0
  %v651 = vmax.f32 %v643, 0.0
  %v652 = vmax.f32 %v644, 0.0
  %v653 = vmax.f32 %v645, 0.0
  %v654 = vmax.f32 %v646, 0.0
  %655 = vst [vmem:[%s3] sm:$0xff] %v647
  %656 = vst [vmem:[%s3 + $0x8] sm:$0xff] %v648
  %657 = vst [vmem:[%s3 + $0x10] sm:$0xff] %v649
  %658 = vst [vmem:[%s3 + $0x18] sm:$0xff] %v650
  %659 = vst [vmem:[%s3 + $0x20] sm:$0xff] %v651
  %660 = vst [vmem:[%s3 + $0x28] sm:$0xff] %v652
  %661 = vst [vmem:[%s3 + $0x30] sm:$0xff] %v653
  %662 = vst [vmem:[%s3 + $0x38] sm:$0xff] %v654
  // Predicated region
  $region14: #{cnn_forward.3} parent=0 // pred_check
    _
  $region15: #{cnn_forward.3} parent=0 // pred_check_branch
    %664 = sbr.rel (0) target = $region17
  $region16: #{cnn_forward.3} parent=0 // pred_region
    _
  $region17: #{cnn_forward.3} parent=0 // pred_fallthru
    _
  // Predicated region
  $region18: #{cnn_forward.3} parent=0 // pred_check
    _
  $region19: #{cnn_forward.3} parent=0 // pred_check_branch
    %666 = sbr.rel (0) target = $region21
  $region20: #{cnn_forward.3} parent=0 // pred_region
    _
  $region21: #{cnn_forward.3} parent=0 // pred_fallthru
    _

// kernel: cnn_forward.4
$region0: #{cnn_forward.4}
  #allocation0 [shape = 'u32[]', space=smem, size = 0x4, offset = 0x4, fixed_abs, tag = 'smem constant byte address 0x4 - core index']
  #allocation1 [shape = 'u32[72,128]{1,0:T(1,128)}', space=vmem, size = 0x9000, scoped, tag = 'internal scratch']
  %s0 = inlined_call_operand.vmem [shape: f32[4,400,128], index: 0, kind: input, shape index: {}]
  %s1 = inlined_call_operand.vmem [shape: f32[32,400], index: 1, kind: input, shape index: {}]
  %s2 = inlined_call_operand.vmem [shape: f32[32,1], index: 2, kind: input, shape index: {}]
  %s3 = inlined_call_operand.vmem [shape: f32[32,128], index: 3, kind: output, shape index: {}]
  %s4 = sld [smem:[#allocation0]]
  $region22: #{cnn_forward.4} parent=0
    _
  %s6 = ssub.s32 1, %s4
  %s7 = scalar_select 0, %s6, %s4
  // Predicated region
  $region2: #{cnn_forward.4} parent=0 // pred_check
    _
  $region3: #{cnn_forward.4} parent=0 // pred_check_branch
    %9 = sbr.rel (0) target = $region5
  $region4: #{cnn_forward.4} parent=0 // pred_region
    _
  $region5: #{cnn_forward.4} parent=0 // pred_fallthru
    _
  // Predicated region
  $region6: #{cnn_forward.4} parent=0 // pred_check
    _
  $region7: #{cnn_forward.4} parent=0 // pred_check_branch
    %11 = sbr.rel (0) target = $region9
  $region8: #{cnn_forward.4} parent=0 // pred_region
    _
  $region9: #{cnn_forward.4} parent=0 // pred_fallthru
    _
  // Predicated region
  $region10: #{cnn_forward.4} parent=0 // pred_check
    _
  $region11: #{cnn_forward.4} parent=0 // pred_check_branch
    %13 = sbr.rel (0) target = $region13
  $region12: #{cnn_forward.4} parent=0 // pred_region
    _
  $region13: #{cnn_forward.4} parent=0 // pred_fallthru
    _
  %v14 = vld [vmem:[%s1] sm:$0xff]
  %v15 = vld [vmem:[%s1 + $0x8] sm:$0xff]
  %v16 = vld [vmem:[%s1 + $0x10] sm:$0xff]
  %v17 = vld [vmem:[%s1 + $0x18] sm:$0xff]
  %v18 = vld [vmem:[%s1 + $0x20] sm:$0xff]
  %v19 = vld [vmem:[%s1 + $0x28] sm:$0xff]
  %v20 = vld [vmem:[%s1 + $0x30] sm:$0xff]
  %v21 = vld [vmem:[%s1 + $0x38] sm:$0xff]
  %v22 = vld [vmem:[%s1 + $0x40] sm:$0xff]
  %v23 = vld [vmem:[%s1 + $0x48] sm:$0xff]
  %v24 = vld [vmem:[%s1 + $0x50] sm:$0xff]
  %v25 = vld [vmem:[%s1 + $0x58] sm:$0xff]
  %v26 = vld [vmem:[%s1 + $0x60] sm:$0xff]
  %v27 = vld [vmem:[%s1 + $0x68] sm:$0xff]
  %v28 = vld [vmem:[%s1 + $0x70] sm:$0xff]
  %v29 = vld [vmem:[%s1 + $0x78] sm:$0xff]
  %v30 = vld [vmem:[%s0] sm:$0xff]
  %v31 = vld [vmem:[%s0 + $0x8] sm:$0xff]
  %v32 = vld [vmem:[%s0 + $0x10] sm:$0xff]
  %v33 = vld [vmem:[%s0 + $0x18] sm:$0xff]
  %v34 = vld [vmem:[%s0 + $0x20] sm:$0xff]
  %v35 = vld [vmem:[%s0 + $0x28] sm:$0xff]
  %v36 = vld [vmem:[%s0 + $0x30] sm:$0xff]
  %v37 = vld [vmem:[%s0 + $0x38] sm:$0xff]
  %v38 = vld [vmem:[%s0 + $0x40] sm:$0xff]
  %v39 = vld [vmem:[%s0 + $0x48] sm:$0xff]
  %v40 = vld [vmem:[%s0 + $0x50] sm:$0xff]
  %v41 = vld [vmem:[%s0 + $0x58] sm:$0xff]
  %v42 = vld [vmem:[%s0 + $0x60] sm:$0xff]
  %v43 = vld [vmem:[%s0 + $0x68] sm:$0xff]
  %v44 = vld [vmem:[%s0 + $0x70] sm:$0xff]
  %v45 = vld [vmem:[%s0 + $0x78] sm:$0xff]
  %v46 = vld [vmem:[%s0 + $0x80] sm:$0xff]
  %v47 = vld [vmem:[%s0 + $0x88] sm:$0xff]
  %v48 = vld [vmem:[%s0 + $0x90] sm:$0xff]
  %v49 = vld [vmem:[%s0 + $0x98] sm:$0xff]
  %v50 = vld [vmem:[%s0 + $0xa0] sm:$0xff]
  %v51 = vld [vmem:[%s0 + $0xa8] sm:$0xff]
  %v52 = vld [vmem:[%s0 + $0xb0] sm:$0xff]
  %v53 = vld [vmem:[%s0 + $0xb8] sm:$0xff]
  %v54 = vld [vmem:[%s0 + $0xc0] sm:$0xff]
  %v55 = vld [vmem:[%s0 + $0xc8] sm:$0xff]
  %v56 = vld [vmem:[%s0 + $0xd0] sm:$0xff]
  %v57 = vld [vmem:[%s0 + $0xd8] sm:$0xff]
  %v58 = vld [vmem:[%s0 + $0xe0] sm:$0xff]
  %v59 = vld [vmem:[%s0 + $0xe8] sm:$0xff]
  %v60 = vld [vmem:[%s0 + $0xf0] sm:$0xff]
  %v61 = vld [vmem:[%s0 + $0xf8] sm:$0xff]
  %v62 = vld [vmem:[%s0 + $0x100] sm:$0xff]
  %v63 = vld [vmem:[%s0 + $0x108] sm:$0xff]
  %v64 = vld [vmem:[%s0 + $0x110] sm:$0xff]
  %v65 = vld [vmem:[%s0 + $0x118] sm:$0xff]
  %v66 = vld [vmem:[%s0 + $0x120] sm:$0xff]
  %v67 = vld [vmem:[%s0 + $0x128] sm:$0xff]
  %v68 = vld [vmem:[%s0 + $0x130] sm:$0xff]
  %v69 = vld [vmem:[%s0 + $0x138] sm:$0xff]
  %v70 = vld [vmem:[%s0 + $0x140] sm:$0xff]
  %v71 = vld [vmem:[%s0 + $0x148] sm:$0xff]
  %v72 = vld [vmem:[%s0 + $0x150] sm:$0xff]
  %v73 = vld [vmem:[%s0 + $0x158] sm:$0xff]
  %v74 = vld [vmem:[%s0 + $0x160] sm:$0xff]
  %v75 = vld [vmem:[%s0 + $0x168] sm:$0xff]
  %v76 = vld [vmem:[%s0 + $0x170] sm:$0xff]
  %v77 = vld [vmem:[%s0 + $0x178] sm:$0xff]
  %v78 = vld [vmem:[%s0 + $0x180] sm:$0xff]
  %v79 = vld [vmem:[%s0 + $0x188] sm:$0xff]
  %vm80 = vcmask 130048
  %v82 = vsel %vm80, %v17, 0
  %v85 = vsel %vm80, %v21, 0
  %v88 = vsel %vm80, %v25, 0
  %v91 = vsel %vm80, %v29, 0
  %93 = vmatpush.msra.mxu0 %v45
  %94 = vmatpush.msra.mxu0 %v44
  %95 = vmatpush.msra.mxu0 %v43
  %96 = vmatpush.msra.mxu0 %v42
  %97 = vmatpush.msra.mxu0 %v41
  %98 = vmatpush.msra.mxu0 %v40
  %99 = vmatpush.msra.mxu0 %v39
  %100 = vmatpush.msra.mxu0 %v38
  %101 = vmatpush.msra.mxu0 %v37
  %102 = vmatpush.msra.mxu0 %v36
  %103 = vmatpush.msra.mxu0 %v35
  %104 = vmatpush.msra.mxu0 %v34
  %105 = vmatpush.msra.mxu0 %v33
  %106 = vmatpush.msra.mxu0 %v32
  %107 = vmatpush.msra.mxu0 %v31
  %108 = vmatpush.msra.mxu0 %v30
  %109 = vmatmul.f32.gmra.mxu0 %v14
  %v110 = vpop.f32.mrf.mxu0
  %v111 = vadd.f32 0.0, %v110
  %112 = vmatmul.f32.gmra.mxu0 %v18
  %v113 = vpop.f32.mrf.mxu0
  %v114 = vadd.f32 0.0, %v113
  %115 = vmatmul.f32.gmra.mxu0 %v22
  %v116 = vpop.f32.mrf.mxu0
  %v117 = vadd.f32 0.0, %v116
  %118 = vmatmul.f32.gmra.mxu0 %v26
  %v119 = vpop.f32.mrf.mxu0
  %v120 = vadd.f32 0.0, %v119
  %121 = vdwg.mxu0
  %122 = vmatpush.msra.mxu0 %v61
  %123 = vmatpush.msra.mxu0 %v60
  %124 = vmatpush.msra.mxu0 %v59
  %125 = vmatpush.msra.mxu0 %v58
  %126 = vmatpush.msra.mxu0 %v57
  %127 = vmatpush.msra.mxu0 %v56
  %128 = vmatpush.msra.mxu0 %v55
  %129 = vmatpush.msra.mxu0 %v54
  %130 = vmatpush.msra.mxu0 %v53
  %131 = vmatpush.msra.mxu0 %v52
  %132 = vmatpush.msra.mxu0 %v51
  %133 = vmatpush.msra.mxu0 %v50
  %134 = vmatpush.msra.mxu0 %v49
  %135 = vmatpush.msra.mxu0 %v48
  %136 = vmatpush.msra.mxu0 %v47
  %137 = vmatpush.msra.mxu0 %v46
  %138 = vmatmul.f32.gmra.mxu0 %v15
  %v139 = vpop.f32.mrf.mxu0
  %v140 = vadd.f32 %v111, %v139
  %141 = vmatmul.f32.gmra.mxu0 %v19
  %v142 = vpop.f32.mrf.mxu0
  %v143 = vadd.f32 %v114, %v142
  %144 = vmatmul.f32.gmra.mxu0 %v23
  %v145 = vpop.f32.mrf.mxu0
  %v146 = vadd.f32 %v117, %v145
  %147 = vmatmul.f32.gmra.mxu0 %v27
  %v148 = vpop.f32.mrf.mxu0
  %v149 = vadd.f32 %v120, %v148
  %150 = vdwg.mxu0
  %151 = vmatpush.msra.mxu0 %v77
  %152 = vmatpush.msra.mxu0 %v76
  %153 = vmatpush.msra.mxu0 %v75
  %154 = vmatpush.msra.mxu0 %v74
  %155 = vmatpush.msra.mxu0 %v73
  %156 = vmatpush.msra.mxu0 %v72
  %157 = vmatpush.msra.mxu0 %v71
  %158 = vmatpush.msra.mxu0 %v70
  %159 = vmatpush.msra.mxu0 %v69
  %160 = vmatpush.msra.mxu0 %v68
  %161 = vmatpush.msra.mxu0 %v67
  %162 = vmatpush.msra.mxu0 %v66
  %163 = vmatpush.msra.mxu0 %v65
  %164 = vmatpush.msra.mxu0 %v64
  %165 = vmatpush.msra.mxu0 %v63
  %166 = vmatpush.msra.mxu0 %v62
  %167 = vmatmul.f32.gmra.mxu0 %v16
  %v168 = vpop.f32.mrf.mxu0
  %v169 = vadd.f32 %v140, %v168
  %170 = vmatmul.f32.gmra.mxu0 %v20
  %v171 = vpop.f32.mrf.mxu0
  %v172 = vadd.f32 %v143, %v171
  %173 = vmatmul.f32.gmra.mxu0 %v24
  %v174 = vpop.f32.mrf.mxu0
  %v175 = vadd.f32 %v146, %v174
  %176 = vmatmul.f32.gmra.mxu0 %v28
  %v177 = vpop.f32.mrf.mxu0
  %v178 = vadd.f32 %v149, %v177
  %179 = vdwg.mxu0
  %180 = vmatpush.msra.mxu0 0.0
  %181 = vmatpush.msra.mxu0 0.0
  %182 = vmatpush.msra.mxu0 0.0
  %183 = vmatpush.msra.mxu0 0.0
  %184 = vmatpush.msra.mxu0 0.0
  %185 = vmatpush.msra.mxu0 0.0
  %186 = vmatpush.msra.mxu0 0.0
  %187 = vmatpush.msra.mxu0 0.0
  %188 = vmatpush.msra.mxu0 0.0
  %189 = vmatpush.msra.mxu0 0.0
  %190 = vmatpush.msra.mxu0 0.0
  %191 = vmatpush.msra.mxu0 0.0
  %192 = vmatpush.msra.mxu0 0.0
  %193 = vmatpush.msra.mxu0 0.0
  %194 = vmatpush.msra.mxu0 %v79
  %195 = vmatpush.msra.mxu0 %v78
  %196 = vmatmul.f32.gmra.mxu0 %v82
  %v197 = vpop.f32.mrf.mxu0
  %v198 = vadd.f32 %v169, %v197
  %199 = vmatmul.f32.gmra.mxu0 %v85
  %v200 = vpop.f32.mrf.mxu0
  %v201 = vadd.f32 %v172, %v200
  %202 = vmatmul.f32.gmra.mxu0 %v88
  %v203 = vpop.f32.mrf.mxu0
  %v204 = vadd.f32 %v175, %v203
  %205 = vmatmul.f32.gmra.mxu0 %v91
  %v206 = vpop.f32.mrf.mxu0
  %v207 = vadd.f32 %v178, %v206
  %208 = vdwg.mxu0
  %s209 = scalar_lea.vmem %s0, 400
  %v210 = vld [vmem:[%s209] sm:$0xff]
  %v211 = vld [vmem:[%s209 + $0x8] sm:$0xff]
  %v212 = vld [vmem:[%s209 + $0x10] sm:$0xff]
  %v213 = vld [vmem:[%s209 + $0x18] sm:$0xff]
  %v214 = vld [vmem:[%s209 + $0x20] sm:$0xff]
  %v215 = vld [vmem:[%s209 + $0x28] sm:$0xff]
  %v216 = vld [vmem:[%s209 + $0x30] sm:$0xff]
  %v217 = vld [vmem:[%s209 + $0x38] sm:$0xff]
  %v218 = vld [vmem:[%s209 + $0x40] sm:$0xff]
  %v219 = vld [vmem:[%s209 + $0x48] sm:$0xff]
  %v220 = vld [vmem:[%s209 + $0x50] sm:$0xff]
  %v221 = vld [vmem:[%s209 + $0x58] sm:$0xff]
  %v222 = vld [vmem:[%s209 + $0x60] sm:$0xff]
  %v223 = vld [vmem:[%s209 + $0x68] sm:$0xff]
  %v224 = vld [vmem:[%s209 + $0x70] sm:$0xff]
  %v225 = vld [vmem:[%s209 + $0x78] sm:$0xff]
  %v226 = vld [vmem:[%s209 + $0x80] sm:$0xff]
  %v227 = vld [vmem:[%s209 + $0x88] sm:$0xff]
  %v228 = vld [vmem:[%s209 + $0x90] sm:$0xff]
  %v229 = vld [vmem:[%s209 + $0x98] sm:$0xff]
  %v230 = vld [vmem:[%s209 + $0xa0] sm:$0xff]
  %v231 = vld [vmem:[%s209 + $0xa8] sm:$0xff]
  %v232 = vld [vmem:[%s209 + $0xb0] sm:$0xff]
  %v233 = vld [vmem:[%s209 + $0xb8] sm:$0xff]
  %v234 = vld [vmem:[%s209 + $0xc0] sm:$0xff]
  %v235 = vld [vmem:[%s209 + $0xc8] sm:$0xff]
  %v236 = vld [vmem:[%s209 + $0xd0] sm:$0xff]
  %v237 = vld [vmem:[%s209 + $0xd8] sm:$0xff]
  %v238 = vld [vmem:[%s209 + $0xe0] sm:$0xff]
  %v239 = vld [vmem:[%s209 + $0xe8] sm:$0xff]
  %v240 = vld [vmem:[%s209 + $0xf0] sm:$0xff]
  %v241 = vld [vmem:[%s209 + $0xf8] sm:$0xff]
  %v242 = vld [vmem:[%s209 + $0x100] sm:$0xff]
  %v243 = vld [vmem:[%s209 + $0x108] sm:$0xff]
  %v244 = vld [vmem:[%s209 + $0x110] sm:$0xff]
  %v245 = vld [vmem:[%s209 + $0x118] sm:$0xff]
  %v246 = vld [vmem:[%s209 + $0x120] sm:$0xff]
  %v247 = vld [vmem:[%s209 + $0x128] sm:$0xff]
  %v248 = vld [vmem:[%s209 + $0x130] sm:$0xff]
  %v249 = vld [vmem:[%s209 + $0x138] sm:$0xff]
  %v250 = vld [vmem:[%s209 + $0x140] sm:$0xff]
  %v251 = vld [vmem:[%s209 + $0x148] sm:$0xff]
  %v252 = vld [vmem:[%s209 + $0x150] sm:$0xff]
  %v253 = vld [vmem:[%s209 + $0x158] sm:$0xff]
  %v254 = vld [vmem:[%s209 + $0x160] sm:$0xff]
  %v255 = vld [vmem:[%s209 + $0x168] sm:$0xff]
  %v256 = vld [vmem:[%s209 + $0x170] sm:$0xff]
  %v257 = vld [vmem:[%s209 + $0x178] sm:$0xff]
  %v258 = vld [vmem:[%s209 + $0x180] sm:$0xff]
  %v259 = vld [vmem:[%s209 + $0x188] sm:$0xff]
  %260 = vmatpush.msra.mxu0 %v225
  %261 = vmatpush.msra.mxu0 %v224
  %262 = vmatpush.msra.mxu0 %v223
  %263 = vmatpush.msra.mxu0 %v222
  %264 = vmatpush.msra.mxu0 %v221
  %265 = vmatpush.msra.mxu0 %v220
  %266 = vmatpush.msra.mxu0 %v219
  %267 = vmatpush.msra.mxu0 %v218
  %268 = vmatpush.msra.mxu0 %v217
  %269 = vmatpush.msra.mxu0 %v216
  %270 = vmatpush.msra.mxu0 %v215
  %271 = vmatpush.msra.mxu0 %v214
  %272 = vmatpush.msra.mxu0 %v213
  %273 = vmatpush.msra.mxu0 %v212
  %274 = vmatpush.msra.mxu0 %v211
  %275 = vmatpush.msra.mxu0 %v210
  %276 = vmatmul.f32.gmra.mxu0 %v14
  %v277 = vpop.f32.mrf.mxu0
  %v278 = vadd.f32 0.0, %v277
  %279 = vmatmul.f32.gmra.mxu0 %v18
  %v280 = vpop.f32.mrf.mxu0
  %v281 = vadd.f32 0.0, %v280
  %282 = vmatmul.f32.gmra.mxu0 %v22
  %v283 = vpop.f32.mrf.mxu0
  %v284 = vadd.f32 0.0, %v283
  %285 = vmatmul.f32.gmra.mxu0 %v26
  %v286 = vpop.f32.mrf.mxu0
  %v287 = vadd.f32 0.0, %v286
  %288 = vdwg.mxu0
  %289 = vmatpush.msra.mxu0 %v241
  %290 = vmatpush.msra.mxu0 %v240
  %291 = vmatpush.msra.mxu0 %v239
  %292 = vmatpush.msra.mxu0 %v238
  %293 = vmatpush.msra.mxu0 %v237
  %294 = vmatpush.msra.mxu0 %v236
  %295 = vmatpush.msra.mxu0 %v235
  %296 = vmatpush.msra.mxu0 %v234
  %297 = vmatpush.msra.mxu0 %v233
  %298 = vmatpush.msra.mxu0 %v232
  %299 = vmatpush.msra.mxu0 %v231
  %300 = vmatpush.msra.mxu0 %v230
  %301 = vmatpush.msra.mxu0 %v229
  %302 = vmatpush.msra.mxu0 %v228
  %303 = vmatpush.msra.mxu0 %v227
  %304 = vmatpush.msra.mxu0 %v226
  %305 = vmatmul.f32.gmra.mxu0 %v15
  %v306 = vpop.f32.mrf.mxu0
  %v307 = vadd.f32 %v278, %v306
  %308 = vmatmul.f32.gmra.mxu0 %v19
  %v309 = vpop.f32.mrf.mxu0
  %v310 = vadd.f32 %v281, %v309
  %311 = vmatmul.f32.gmra.mxu0 %v23
  %v312 = vpop.f32.mrf.mxu0
  %v313 = vadd.f32 %v284, %v312
  %314 = vmatmul.f32.gmra.mxu0 %v27
  %v315 = vpop.f32.mrf.mxu0
  %v316 = vadd.f32 %v287, %v315
  %317 = vdwg.mxu0
  %318 = vmatpush.msra.mxu0 %v257
  %319 = vmatpush.msra.mxu0 %v256
  %320 = vmatpush.msra.mxu0 %v255
  %321 = vmatpush.msra.mxu0 %v254
  %322 = vmatpush.msra.mxu0 %v253
  %323 = vmatpush.msra.mxu0 %v252
  %324 = vmatpush.msra.mxu0 %v251
  %325 = vmatpush.msra.mxu0 %v250
  %326 = vmatpush.msra.mxu0 %v249
  %327 = vmatpush.msra.mxu0 %v248
  %328 = vmatpush.msra.mxu0 %v247
  %329 = vmatpush.msra.mxu0 %v246
  %330 = vmatpush.msra.mxu0 %v245
  %331 = vmatpush.msra.mxu0 %v244
  %332 = vmatpush.msra.mxu0 %v243
  %333 = vmatpush.msra.mxu0 %v242
  %334 = vmatmul.f32.gmra.mxu0 %v16
  %v335 = vpop.f32.mrf.mxu0
  %v336 = vadd.f32 %v307, %v335
  %337 = vmatmul.f32.gmra.mxu0 %v20
  %v338 = vpop.f32.mrf.mxu0
  %v339 = vadd.f32 %v310, %v338
  %340 = vmatmul.f32.gmra.mxu0 %v24
  %v341 = vpop.f32.mrf.mxu0
  %v342 = vadd.f32 %v313, %v341
  %343 = vmatmul.f32.gmra.mxu0 %v28
  %v344 = vpop.f32.mrf.mxu0
  %v345 = vadd.f32 %v316, %v344
  %346 = vdwg.mxu0
  %347 = vmatpush.msra.mxu0 0.0
  %348 = vmatpush.msra.mxu0 0.0
  %349 = vmatpush.msra.mxu0 0.0
  %350 = vmatpush.msra.mxu0 0.0
  %351 = vmatpush.msra.mxu0 0.0
  %352 = vmatpush.msra.mxu0 0.0
  %353 = vmatpush.msra.mxu0 0.0
  %354 = vmatpush.msra.mxu0 0.0
  %355 = vmatpush.msra.mxu0 0.0
  %356 = vmatpush.msra.mxu0 0.0
  %357 = vmatpush.msra.mxu0 0.0
  %358 = vmatpush.msra.mxu0 0.0
  %359 = vmatpush.msra.mxu0 0.0
  %360 = vmatpush.msra.mxu0 0.0
  %361 = vmatpush.msra.mxu0 %v259
  %362 = vmatpush.msra.mxu0 %v258
  %363 = vmatmul.f32.gmra.mxu0 %v82
  %v364 = vpop.f32.mrf.mxu0
  %v365 = vadd.f32 %v336, %v364
  %366 = vmatmul.f32.gmra.mxu0 %v85
  %v367 = vpop.f32.mrf.mxu0
  %v368 = vadd.f32 %v339, %v367
  %369 = vmatmul.f32.gmra.mxu0 %v88
  %v370 = vpop.f32.mrf.mxu0
  %v371 = vadd.f32 %v342, %v370
  %372 = vmatmul.f32.gmra.mxu0 %v91
  %v373 = vpop.f32.mrf.mxu0
  %v374 = vadd.f32 %v345, %v373
  %375 = vdwg.mxu0
  %s376 = scalar_lea.vmem %s0, 800
  %v377 = vld [vmem:[%s376] sm:$0xff]
  %v378 = vld [vmem:[%s376 + $0x8] sm:$0xff]
  %v379 = vld [vmem:[%s376 + $0x10] sm:$0xff]
  %v380 = vld [vmem:[%s376 + $0x18] sm:$0xff]
  %v381 = vld [vmem:[%s376 + $0x20] sm:$0xff]
  %v382 = vld [vmem:[%s376 + $0x28] sm:$0xff]
  %v383 = vld [vmem:[%s376 + $0x30] sm:$0xff]
  %v384 = vld [vmem:[%s376 + $0x38] sm:$0xff]
  %v385 = vld [vmem:[%s376 + $0x40] sm:$0xff]
  %v386 = vld [vmem:[%s376 + $0x48] sm:$0xff]
  %v387 = vld [vmem:[%s376 + $0x50] sm:$0xff]
  %v388 = vld [vmem:[%s376 + $0x58] sm:$0xff]
  %v389 = vld [vmem:[%s376 + $0x60] sm:$0xff]
  %v390 = vld [vmem:[%s376 + $0x68] sm:$0xff]
  %v391 = vld [vmem:[%s376 + $0x70] sm:$0xff]
  %v392 = vld [vmem:[%s376 + $0x78] sm:$0xff]
  %v393 = vld [vmem:[%s376 + $0x80] sm:$0xff]
  %v394 = vld [vmem:[%s376 + $0x88] sm:$0xff]
  %v395 = vld [vmem:[%s376 + $0x90] sm:$0xff]
  %v396 = vld [vmem:[%s376 + $0x98] sm:$0xff]
  %v397 = vld [vmem:[%s376 + $0xa0] sm:$0xff]
  %v398 = vld [vmem:[%s376 + $0xa8] sm:$0xff]
  %v399 = vld [vmem:[%s376 + $0xb0] sm:$0xff]
  %v400 = vld [vmem:[%s376 + $0xb8] sm:$0xff]
  %v401 = vld [vmem:[%s376 + $0xc0] sm:$0xff]
  %v402 = vld [vmem:[%s376 + $0xc8] sm:$0xff]
  %v403 = vld [vmem:[%s376 + $0xd0] sm:$0xff]
  %v404 = vld [vmem:[%s376 + $0xd8] sm:$0xff]
  %v405 = vld [vmem:[%s376 + $0xe0] sm:$0xff]
  %v406 = vld [vmem:[%s376 + $0xe8] sm:$0xff]
  %v407 = vld [vmem:[%s376 + $0xf0] sm:$0xff]
  %v408 = vld [vmem:[%s376 + $0xf8] sm:$0xff]
  %v409 = vld [vmem:[%s376 + $0x100] sm:$0xff]
  %v410 = vld [vmem:[%s376 + $0x108] sm:$0xff]
  %v411 = vld [vmem:[%s376 + $0x110] sm:$0xff]
  %v412 = vld [vmem:[%s376 + $0x118] sm:$0xff]
  %v413 = vld [vmem:[%s376 + $0x120] sm:$0xff]
  %v414 = vld [vmem:[%s376 + $0x128] sm:$0xff]
  %v415 = vld [vmem:[%s376 + $0x130] sm:$0xff]
  %v416 = vld [vmem:[%s376 + $0x138] sm:$0xff]
  %v417 = vld [vmem:[%s376 + $0x140] sm:$0xff]
  %v418 = vld [vmem:[%s376 + $0x148] sm:$0xff]
  %v419 = vld [vmem:[%s376 + $0x150] sm:$0xff]
  %v420 = vld [vmem:[%s376 + $0x158] sm:$0xff]
  %v421 = vld [vmem:[%s376 + $0x160] sm:$0xff]
  %v422 = vld [vmem:[%s376 + $0x168] sm:$0xff]
  %v423 = vld [vmem:[%s376 + $0x170] sm:$0xff]
  %v424 = vld [vmem:[%s376 + $0x178] sm:$0xff]
  %v425 = vld [vmem:[%s376 + $0x180] sm:$0xff]
  %v426 = vld [vmem:[%s376 + $0x188] sm:$0xff]
  %427 = vmatpush.msra.mxu0 %v392
  %428 = vmatpush.msra.mxu0 %v391
  %429 = vmatpush.msra.mxu0 %v390
  %430 = vmatpush.msra.mxu0 %v389
  %431 = vmatpush.msra.mxu0 %v388
  %432 = vmatpush.msra.mxu0 %v387
  %433 = vmatpush.msra.mxu0 %v386
  %434 = vmatpush.msra.mxu0 %v385
  %435 = vmatpush.msra.mxu0 %v384
  %436 = vmatpush.msra.mxu0 %v383
  %437 = vmatpush.msra.mxu0 %v382
  %438 = vmatpush.msra.mxu0 %v381
  %439 = vmatpush.msra.mxu0 %v380
  %440 = vmatpush.msra.mxu0 %v379
  %441 = vmatpush.msra.mxu0 %v378
  %442 = vmatpush.msra.mxu0 %v377
  %443 = vmatmul.f32.gmra.mxu0 %v14
  %v444 = vpop.f32.mrf.mxu0
  %v445 = vadd.f32 0.0, %v444
  %446 = vmatmul.f32.gmra.mxu0 %v18
  %v447 = vpop.f32.mrf.mxu0
  %v448 = vadd.f32 0.0, %v447
  %449 = vmatmul.f32.gmra.mxu0 %v22
  %v450 = vpop.f32.mrf.mxu0
  %v451 = vadd.f32 0.0, %v450
  %452 = vmatmul.f32.gmra.mxu0 %v26
  %v453 = vpop.f32.mrf.mxu0
  %v454 = vadd.f32 0.0, %v453
  %455 = vdwg.mxu0
  %456 = vmatpush.msra.mxu0 %v408
  %457 = vmatpush.msra.mxu0 %v407
  %458 = vmatpush.msra.mxu0 %v406
  %459 = vmatpush.msra.mxu0 %v405
  %460 = vmatpush.msra.mxu0 %v404
  %461 = vmatpush.msra.mxu0 %v403
  %462 = vmatpush.msra.mxu0 %v402
  %463 = vmatpush.msra.mxu0 %v401
  %464 = vmatpush.msra.mxu0 %v400
  %465 = vmatpush.msra.mxu0 %v399
  %466 = vmatpush.msra.mxu0 %v398
  %467 = vmatpush.msra.mxu0 %v397
  %468 = vmatpush.msra.mxu0 %v396
  %469 = vmatpush.msra.mxu0 %v395
  %470 = vmatpush.msra.mxu0 %v394
  %471 = vmatpush.msra.mxu0 %v393
  %472 = vmatmul.f32.gmra.mxu0 %v15
  %v473 = vpop.f32.mrf.mxu0
  %v474 = vadd.f32 %v445, %v473
  %475 = vmatmul.f32.gmra.mxu0 %v19
  %v476 = vpop.f32.mrf.mxu0
  %v477 = vadd.f32 %v448, %v476
  %478 = vmatmul.f32.gmra.mxu0 %v23
  %v479 = vpop.f32.mrf.mxu0
  %v480 = vadd.f32 %v451, %v479
  %481 = vmatmul.f32.gmra.mxu0 %v27
  %v482 = vpop.f32.mrf.mxu0
  %v483 = vadd.f32 %v454, %v482
  %484 = vdwg.mxu0
  %485 = vmatpush.msra.mxu0 %v424
  %486 = vmatpush.msra.mxu0 %v423
  %487 = vmatpush.msra.mxu0 %v422
  %488 = vmatpush.msra.mxu0 %v421
  %489 = vmatpush.msra.mxu0 %v420
  %490 = vmatpush.msra.mxu0 %v419
  %491 = vmatpush.msra.mxu0 %v418
  %492 = vmatpush.msra.mxu0 %v417
  %493 = vmatpush.msra.mxu0 %v416
  %494 = vmatpush.msra.mxu0 %v415
  %495 = vmatpush.msra.mxu0 %v414
  %496 = vmatpush.msra.mxu0 %v413
  %497 = vmatpush.msra.mxu0 %v412
  %498 = vmatpush.msra.mxu0 %v411
  %499 = vmatpush.msra.mxu0 %v410
  %500 = vmatpush.msra.mxu0 %v409
  %501 = vmatmul.f32.gmra.mxu0 %v16
  %v502 = vpop.f32.mrf.mxu0
  %v503 = vadd.f32 %v474, %v502
  %504 = vmatmul.f32.gmra.mxu0 %v20
  %v505 = vpop.f32.mrf.mxu0
  %v506 = vadd.f32 %v477, %v505
  %507 = vmatmul.f32.gmra.mxu0 %v24
  %v508 = vpop.f32.mrf.mxu0
  %v509 = vadd.f32 %v480, %v508
  %510 = vmatmul.f32.gmra.mxu0 %v28
  %v511 = vpop.f32.mrf.mxu0
  %v512 = vadd.f32 %v483, %v511
  %513 = vdwg.mxu0
  %514 = vmatpush.msra.mxu0 0.0
  %515 = vmatpush.msra.mxu0 0.0
  %516 = vmatpush.msra.mxu0 0.0
  %517 = vmatpush.msra.mxu0 0.0
  %518 = vmatpush.msra.mxu0 0.0
  %519 = vmatpush.msra.mxu0 0.0
  %520 = vmatpush.msra.mxu0 0.0
  %521 = vmatpush.msra.mxu0 0.0
  %522 = vmatpush.msra.mxu0 0.0
  %523 = vmatpush.msra.mxu0 0.0
  %524 = vmatpush.msra.mxu0 0.0
  %525 = vmatpush.msra.mxu0 0.0
  %526 = vmatpush.msra.mxu0 0.0
  %527 = vmatpush.msra.mxu0 0.0
  %528 = vmatpush.msra.mxu0 %v426
  %529 = vmatpush.msra.mxu0 %v425
  %530 = vmatmul.f32.gmra.mxu0 %v82
  %v531 = vpop.f32.mrf.mxu0
  %v532 = vadd.f32 %v503, %v531
  %533 = vmatmul.f32.gmra.mxu0 %v85
  %v534 = vpop.f32.mrf.mxu0
  %v535 = vadd.f32 %v506, %v534
  %536 = vmatmul.f32.gmra.mxu0 %v88
  %v537 = vpop.f32.mrf.mxu0
  %v538 = vadd.f32 %v509, %v537
  %539 = vmatmul.f32.gmra.mxu0 %v91
  %v540 = vpop.f32.mrf.mxu0
  %v541 = vadd.f32 %v512, %v540
  %542 = vdwg.mxu0
  %s543 = scalar_lea.vmem %s0, 1200
  %v544 = vld [vmem:[%s543] sm:$0xff]
  %v545 = vld [vmem:[%s543 + $0x8] sm:$0xff]
  %v546 = vld [vmem:[%s543 + $0x10] sm:$0xff]
  %v547 = vld [vmem:[%s543 + $0x18] sm:$0xff]
  %v548 = vld [vmem:[%s543 + $0x20] sm:$0xff]
  %v549 = vld [vmem:[%s543 + $0x28] sm:$0xff]
  %v550 = vld [vmem:[%s543 + $0x30] sm:$0xff]
  %v551 = vld [vmem:[%s543 + $0x38] sm:$0xff]
  %v552 = vld [vmem:[%s543 + $0x40] sm:$0xff]
  %v553 = vld [vmem:[%s543 + $0x48] sm:$0xff]
  %v554 = vld [vmem:[%s543 + $0x50] sm:$0xff]
  %v555 = vld [vmem:[%s543 + $0x58] sm:$0xff]
  %v556 = vld [vmem:[%s543 + $0x60] sm:$0xff]
  %v557 = vld [vmem:[%s543 + $0x68] sm:$0xff]
  %v558 = vld [vmem:[%s543 + $0x70] sm:$0xff]
  %v559 = vld [vmem:[%s543 + $0x78] sm:$0xff]
  %v560 = vld [vmem:[%s543 + $0x80] sm:$0xff]
  %v561 = vld [vmem:[%s543 + $0x88] sm:$0xff]
  %v562 = vld [vmem:[%s543 + $0x90] sm:$0xff]
  %v563 = vld [vmem:[%s543 + $0x98] sm:$0xff]
  %v564 = vld [vmem:[%s543 + $0xa0] sm:$0xff]
  %v565 = vld [vmem:[%s543 + $0xa8] sm:$0xff]
  %v566 = vld [vmem:[%s543 + $0xb0] sm:$0xff]
  %v567 = vld [vmem:[%s543 + $0xb8] sm:$0xff]
  %v568 = vld [vmem:[%s543 + $0xc0] sm:$0xff]
  %v569 = vld [vmem:[%s543 + $0xc8] sm:$0xff]
  %v570 = vld [vmem:[%s543 + $0xd0] sm:$0xff]
  %v571 = vld [vmem:[%s543 + $0xd8] sm:$0xff]
  %v572 = vld [vmem:[%s543 + $0xe0] sm:$0xff]
  %v573 = vld [vmem:[%s543 + $0xe8] sm:$0xff]
  %v574 = vld [vmem:[%s543 + $0xf0] sm:$0xff]
  %v575 = vld [vmem:[%s543 + $0xf8] sm:$0xff]
  %v576 = vld [vmem:[%s543 + $0x100] sm:$0xff]
  %v577 = vld [vmem:[%s543 + $0x108] sm:$0xff]
  %v578 = vld [vmem:[%s543 + $0x110] sm:$0xff]
  %v579 = vld [vmem:[%s543 + $0x118] sm:$0xff]
  %v580 = vld [vmem:[%s543 + $0x120] sm:$0xff]
  %v581 = vld [vmem:[%s543 + $0x128] sm:$0xff]
  %v582 = vld [vmem:[%s543 + $0x130] sm:$0xff]
  %v583 = vld [vmem:[%s543 + $0x138] sm:$0xff]
  %v584 = vld [vmem:[%s543 + $0x140] sm:$0xff]
  %v585 = vld [vmem:[%s543 + $0x148] sm:$0xff]
  %v586 = vld [vmem:[%s543 + $0x150] sm:$0xff]
  %v587 = vld [vmem:[%s543 + $0x158] sm:$0xff]
  %v588 = vld [vmem:[%s543 + $0x160] sm:$0xff]
  %v589 = vld [vmem:[%s543 + $0x168] sm:$0xff]
  %v590 = vld [vmem:[%s543 + $0x170] sm:$0xff]
  %v591 = vld [vmem:[%s543 + $0x178] sm:$0xff]
  %v592 = vld [vmem:[%s543 + $0x180] sm:$0xff]
  %v593 = vld [vmem:[%s543 + $0x188] sm:$0xff]
  %594 = vmatpush.msra.mxu0 %v559
  %595 = vmatpush.msra.mxu0 %v558
  %596 = vmatpush.msra.mxu0 %v557
  %597 = vmatpush.msra.mxu0 %v556
  %598 = vmatpush.msra.mxu0 %v555
  %599 = vmatpush.msra.mxu0 %v554
  %600 = vmatpush.msra.mxu0 %v553
  %601 = vmatpush.msra.mxu0 %v552
  %602 = vmatpush.msra.mxu0 %v551
  %603 = vmatpush.msra.mxu0 %v550
  %604 = vmatpush.msra.mxu0 %v549
  %605 = vmatpush.msra.mxu0 %v548
  %606 = vmatpush.msra.mxu0 %v547
  %607 = vmatpush.msra.mxu0 %v546
  %608 = vmatpush.msra.mxu0 %v545
  %609 = vmatpush.msra.mxu0 %v544
  %610 = vmatmul.f32.gmra.mxu0 %v14
  %v611 = vpop.f32.mrf.mxu0
  %v612 = vadd.f32 0.0, %v611
  %613 = vmatmul.f32.gmra.mxu0 %v18
  %v614 = vpop.f32.mrf.mxu0
  %v615 = vadd.f32 0.0, %v614
  %616 = vmatmul.f32.gmra.mxu0 %v22
  %v617 = vpop.f32.mrf.mxu0
  %v618 = vadd.f32 0.0, %v617
  %619 = vmatmul.f32.gmra.mxu0 %v26
  %v620 = vpop.f32.mrf.mxu0
  %v621 = vadd.f32 0.0, %v620
  %622 = vdwg.mxu0
  %623 = vmatpush.msra.mxu0 %v575
  %624 = vmatpush.msra.mxu0 %v574
  %625 = vmatpush.msra.mxu0 %v573
  %626 = vmatpush.msra.mxu0 %v572
  %627 = vmatpush.msra.mxu0 %v571
  %628 = vmatpush.msra.mxu0 %v570
  %629 = vmatpush.msra.mxu0 %v569
  %630 = vmatpush.msra.mxu0 %v568
  %631 = vmatpush.msra.mxu0 %v567
  %632 = vmatpush.msra.mxu0 %v566
  %633 = vmatpush.msra.mxu0 %v565
  %634 = vmatpush.msra.mxu0 %v564
  %635 = vmatpush.msra.mxu0 %v563
  %636 = vmatpush.msra.mxu0 %v562
  %637 = vmatpush.msra.mxu0 %v561
  %638 = vmatpush.msra.mxu0 %v560
  %639 = vmatmul.f32.gmra.mxu0 %v15
  %v640 = vpop.f32.mrf.mxu0
  %v641 = vadd.f32 %v612, %v640
  %642 = vmatmul.f32.gmra.mxu0 %v19
  %v643 = vpop.f32.mrf.mxu0
  %v644 = vadd.f32 %v615, %v643
  %645 = vmatmul.f32.gmra.mxu0 %v23
  %v646 = vpop.f32.mrf.mxu0
  %v647 = vadd.f32 %v618, %v646
  %648 = vmatmul.f32.gmra.mxu0 %v27
  %v649 = vpop.f32.mrf.mxu0
  %v650 = vadd.f32 %v621, %v649
  %651 = vdwg.mxu0
  %652 = vmatpush.msra.mxu0 %v591
  %653 = vmatpush.msra.mxu0 %v590
  %654 = vmatpush.msra.mxu0 %v589
  %655 = vmatpush.msra.mxu0 %v588
  %656 = vmatpush.msra.mxu0 %v587
  %657 = vmatpush.msra.mxu0 %v586
  %658 = vmatpush.msra.mxu0 %v585
  %659 = vmatpush.msra.mxu0 %v584
  %660 = vmatpush.msra.mxu0 %v583
  %661 = vmatpush.msra.mxu0 %v582
  %662 = vmatpush.msra.mxu0 %v581
  %663 = vmatpush.msra.mxu0 %v580
  %664 = vmatpush.msra.mxu0 %v579
  %665 = vmatpush.msra.mxu0 %v578
  %666 = vmatpush.msra.mxu0 %v577
  %667 = vmatpush.msra.mxu0 %v576
  %668 = vmatmul.f32.gmra.mxu0 %v16
  %v669 = vpop.f32.mrf.mxu0
  %v670 = vadd.f32 %v641, %v669
  %671 = vmatmul.f32.gmra.mxu0 %v20
  %v672 = vpop.f32.mrf.mxu0
  %v673 = vadd.f32 %v644, %v672
  %674 = vmatmul.f32.gmra.mxu0 %v24
  %v675 = vpop.f32.mrf.mxu0
  %v676 = vadd.f32 %v647, %v675
  %677 = vmatmul.f32.gmra.mxu0 %v28
  %v678 = vpop.f32.mrf.mxu0
  %v679 = vadd.f32 %v650, %v678
  %680 = vdwg.mxu0
  %681 = vmatpush.msra.mxu0 0.0
  %682 = vmatpush.msra.mxu0 0.0
  %683 = vmatpush.msra.mxu0 0.0
  %684 = vmatpush.msra.mxu0 0.0
  %685 = vmatpush.msra.mxu0 0.0
  %686 = vmatpush.msra.mxu0 0.0
  %687 = vmatpush.msra.mxu0 0.0
  %688 = vmatpush.msra.mxu0 0.0
  %689 = vmatpush.msra.mxu0 0.0
  %690 = vmatpush.msra.mxu0 0.0
  %691 = vmatpush.msra.mxu0 0.0
  %692 = vmatpush.msra.mxu0 0.0
  %693 = vmatpush.msra.mxu0 0.0
  %694 = vmatpush.msra.mxu0 0.0
  %695 = vmatpush.msra.mxu0 %v593
  %696 = vmatpush.msra.mxu0 %v592
  %697 = vmatmul.f32.gmra.mxu0 %v82
  %v698 = vpop.f32.mrf.mxu0
  %v699 = vadd.f32 %v670, %v698
  %700 = vmatmul.f32.gmra.mxu0 %v85
  %v701 = vpop.f32.mrf.mxu0
  %v702 = vadd.f32 %v673, %v701
  %703 = vmatmul.f32.gmra.mxu0 %v88
  %v704 = vpop.f32.mrf.mxu0
  %v705 = vadd.f32 %v676, %v704
  %706 = vmatmul.f32.gmra.mxu0 %v91
  %v707 = vpop.f32.mrf.mxu0
  %v708 = vadd.f32 %v679, %v707
  %709 = vdwg.mxu0
  %v710 = vmax.f32 %v198, %v365
  %v711 = vmax.f32 %v201, %v368
  %v712 = vmax.f32 %v204, %v371
  %v713 = vmax.f32 %v207, %v374
  %v714 = vmax.f32 %v532, %v699
  %v715 = vmax.f32 %v535, %v702
  %v716 = vmax.f32 %v538, %v705
  %v717 = vmax.f32 %v541, %v708
  %v718 = vmax.f32 %v710, %v714
  %v719 = vmax.f32 %v711, %v715
  %v720 = vmax.f32 %v712, %v716
  %v721 = vmax.f32 %v713, %v717
  %v722 = vld [vmem:[%s2] sm:$0xff]
  %v723 = vld [vmem:[%s2 + $0x8] sm:$0xff]
  %v724 = vld [vmem:[%s2 + $0x10] sm:$0xff]
  %v725 = vld [vmem:[%s2 + $0x18] sm:$0xff]
  %727 = vset.pattern.permute.xlu0 0
  %728 = vperm.xlu0 %727, %v722
  %v729 = vpop.permute.xlu0 %728
  %732 = vset.pattern.permute.xlu0 0
  %733 = vperm.xlu0 %732, %v723
  %v734 = vpop.permute.xlu0 %733
  %737 = vset.pattern.permute.xlu0 0
  %738 = vperm.xlu0 %737, %v724
  %v739 = vpop.permute.xlu0 %738
  %742 = vset.pattern.permute.xlu0 0
  %743 = vperm.xlu0 %742, %v725
  %v744 = vpop.permute.xlu0 %743
  %v746 = vadd.f32 %v718, %v729
  %v747 = vadd.f32 %v719, %v734
  %v748 = vadd.f32 %v720, %v739
  %v749 = vadd.f32 %v721, %v744
  %v750 = vmax.f32 %v746, 0.0
  %v751 = vmax.f32 %v747, 0.0
  %v752 = vmax.f32 %v748, 0.0
  %v753 = vmax.f32 %v749, 0.0
  %754 = vst [vmem:[%s3] sm:$0xff] %v750
  %755 = vst [vmem:[%s3 + $0x8] sm:$0xff] %v751
  %756 = vst [vmem:[%s3 + $0x10] sm:$0xff] %v752
  %757 = vst [vmem:[%s3 + $0x18] sm:$0xff] %v753
  // Predicated region
  $region14: #{cnn_forward.4} parent=0 // pred_check
    _
  $region15: #{cnn_forward.4} parent=0 // pred_check_branch
    %759 = sbr.rel (0) target = $region17
  $region16: #{cnn_forward.4} parent=0 // pred_region
    _
  $region17: #{cnn_forward.4} parent=0 // pred_fallthru
    _
  // Predicated region
  $region18: #{cnn_forward.4} parent=0 // pred_check
    _
  $region19: #{cnn_forward.4} parent=0 // pred_check_branch
    %761 = sbr.rel (0) target = $region21
  $region20: #{cnn_forward.4} parent=0 // pred_region
    _
  $region21: #{cnn_forward.4} parent=0 // pred_fallthru
    _

// kernel: cnn_forward.5
$region0: #{cnn_forward.5}
  #allocation0 [shape = 'u32[]', space=smem, size = 0x4, offset = 0x4, fixed_abs, tag = 'smem constant byte address 0x4 - core index']
  #allocation1 [shape = 'u32[72,128]{1,0:T(1,128)}', space=vmem, size = 0x9000, scoped, tag = 'internal scratch']
  %s0 = inlined_call_operand.vmem [shape: f32[2,1568], index: 0, kind: input, shape index: {}]
  %s1 = inlined_call_operand.vmem [shape: f32[1568,10], index: 1, kind: input, shape index: {}]
  %s2 = inlined_call_operand.vmem [shape: f32[1,10], index: 2, kind: input, shape index: {}]
  %s3 = inlined_call_operand.hbm [shape: f32[2,10], index: 3, kind: output, shape index: {}]
  %s4 = sld [smem:[#allocation0]]
  $region22: #{cnn_forward.5} parent=0
    _
  %s6 = ssub.s32 1, %s4
  %s7 = scalar_select 0, %s6, %s4
  $region1: #{cnn_forward.5} parent=0
    #allocation2 [shape = 'u8[1024]{0}', space=vmem, size = 0x400, scoped, tag = 'output window, operand 0, single buffered']
    #allocation3 [shape = 's32[1]{0}', space=sflag, size = 0x4, scoped, tag = 'scoped memory for cnn_forward.5']
    %8 = vsyncpa [#allocation3], 0
    // Predicated region
    $region2: #{cnn_forward.5} parent=1 // pred_check
      _
    $region3: #{cnn_forward.5} parent=1 // pred_check_branch
      %10 = sbr.rel (0) target = $region5
    $region4: #{cnn_forward.5} parent=1 // pred_region
      _
    $region5: #{cnn_forward.5} parent=1 // pred_fallthru
      _
    // Predicated region
    $region6: #{cnn_forward.5} parent=1 // pred_check
      _
    $region7: #{cnn_forward.5} parent=1 // pred_check_branch
      %12 = sbr.rel (0) target = $region9
    $region8: #{cnn_forward.5} parent=1 // pred_region
      _
    $region9: #{cnn_forward.5} parent=1 // pred_fallthru
      _
    // Predicated region
    $region10: #{cnn_forward.5} parent=1 // pred_check
      _
    $region11: #{cnn_forward.5} parent=1 // pred_check_branch
      %14 = sbr.rel (0) target = $region13
    $region12: #{cnn_forward.5} parent=1 // pred_region
      _
    $region13: #{cnn_forward.5} parent=1 // pred_fallthru
      _
    %v15 = vld [vmem:[%s0] sm:$0xff]
    %v16 = vld [vmem:[%s0 + $0x8] sm:$0xff]
    %v17 = vld [vmem:[%s0 + $0x10] sm:$0xff]
    %v18 = vld [vmem:[%s0 + $0x18] sm:$0x3]
    %v19 = vld [vmem:[%s1] sm:$0xff]
    %v20 = vld [vmem:[%s1 + $0x8] sm:$0xff]
    %v21 = vld [vmem:[%s1 + $0x10] sm:$0xff]
    %v22 = vld [vmem:[%s1 + $0x18] sm:$0xff]
    %v23 = vld [vmem:[%s1 + $0x20] sm:$0xff]
    %v24 = vld [vmem:[%s1 + $0x28] sm:$0xff]
    %v25 = vld [vmem:[%s1 + $0x30] sm:$0xff]
    %v26 = vld [vmem:[%s1 + $0x38] sm:$0xff]
    %v27 = vld [vmem:[%s1 + $0x40] sm:$0xff]
    %v28 = vld [vmem:[%s1 + $0x48] sm:$0xff]
    %v29 = vld [vmem:[%s1 + $0x50] sm:$0xff]
    %v30 = vld [vmem:[%s1 + $0x58] sm:$0xff]
    %v31 = vld [vmem:[%s1 + $0x60] sm:$0xff]
    %v32 = vld [vmem:[%s1 + $0x68] sm:$0xff]
    %v33 = vld [vmem:[%s1 + $0x70] sm:$0xff]
    %v34 = vld [vmem:[%s1 + $0x78] sm:$0xff]
    %v35 = vld [vmem:[%s1 + $0x80] sm:$0xff]
    %v36 = vld [vmem:[%s1 + $0x88] sm:$0xff]
    %v37 = vld [vmem:[%s1 + $0x90] sm:$0xff]
    %v38 = vld [vmem:[%s1 + $0x98] sm:$0xff]
    %v39 = vld [vmem:[%s1 + $0xa0] sm:$0xff]
    %v40 = vld [vmem:[%s1 + $0xa8] sm:$0xff]
    %v41 = vld [vmem:[%s1 + $0xb0] sm:$0xff]
    %v42 = vld [vmem:[%s1 + $0xb8] sm:$0xff]
    %v43 = vld [vmem:[%s1 + $0xc0] sm:$0xff]
    %v44 = vld [vmem:[%s1 + $0xc8] sm:$0xff]
    %v45 = vld [vmem:[%s1 + $0xd0] sm:$0xff]
    %v46 = vld [vmem:[%s1 + $0xd8] sm:$0xff]
    %v47 = vld [vmem:[%s1 + $0xe0] sm:$0xff]
    %v48 = vld [vmem:[%s1 + $0xe8] sm:$0xff]
    %v49 = vld [vmem:[%s1 + $0xf0] sm:$0xff]
    %v50 = vld [vmem:[%s1 + $0xf8] sm:$0xff]
    %v51 = vld [vmem:[%s1 + $0x100] sm:$0xff]
    %v52 = vld [vmem:[%s1 + $0x108] sm:$0xff]
    %v53 = vld [vmem:[%s1 + $0x110] sm:$0xff]
    %v54 = vld [vmem:[%s1 + $0x118] sm:$0xff]
    %v55 = vld [vmem:[%s1 + $0x120] sm:$0xff]
    %v56 = vld [vmem:[%s1 + $0x128] sm:$0xff]
    %v57 = vld [vmem:[%s1 + $0x130] sm:$0xff]
    %v58 = vld [vmem:[%s1 + $0x138] sm:$0xff]
    %v59 = vld [vmem:[%s1 + $0x140] sm:$0xff]
    %v60 = vld [vmem:[%s1 + $0x148] sm:$0xff]
    %v61 = vld [vmem:[%s1 + $0x150] sm:$0xff]
    %v62 = vld [vmem:[%s1 + $0x158] sm:$0xff]
    %v63 = vld [vmem:[%s1 + $0x160] sm:$0xff]
    %v64 = vld [vmem:[%s1 + $0x168] sm:$0xff]
    %v65 = vld [vmem:[%s1 + $0x170] sm:$0xff]
    %v66 = vld [vmem:[%s1 + $0x178] sm:$0xff]
    %v67 = vld [vmem:[%s1 + $0x180] sm:$0xff]
    %v68 = vld [vmem:[%s1 + $0x188] sm:$0xff]
    %v69 = vld [vmem:[%s1 + $0x190] sm:$0xff]
    %v70 = vld [vmem:[%s1 + $0x198] sm:$0xff]
    %v71 = vld [vmem:[%s1 + $0x1a0] sm:$0xff]
    %v72 = vld [vmem:[%s1 + $0x1a8] sm:$0xff]
    %v73 = vld [vmem:[%s1 + $0x1b0] sm:$0xff]
    %v74 = vld [vmem:[%s1 + $0x1b8] sm:$0xff]
    %v75 = vld [vmem:[%s1 + $0x1c0] sm:$0xff]
    %v76 = vld [vmem:[%s1 + $0x1c8] sm:$0xff]
    %v77 = vld [vmem:[%s1 + $0x1d0] sm:$0xff]
    %v78 = vld [vmem:[%s1 + $0x1d8] sm:$0xff]
    %v79 = vld [vmem:[%s1 + $0x1e0] sm:$0xff]
    %v80 = vld [vmem:[%s1 + $0x1e8] sm:$0xff]
    %v81 = vld [vmem:[%s1 + $0x1f0] sm:$0xff]
    %v82 = vld [vmem:[%s1 + $0x1f8] sm:$0xff]
    %v83 = vld [vmem:[%s1 + $0x200] sm:$0xff]
    %v84 = vld [vmem:[%s1 + $0x208] sm:$0xff]
    %v85 = vld [vmem:[%s1 + $0x210] sm:$0xff]
    %v86 = vld [vmem:[%s1 + $0x218] sm:$0xff]
    %v87 = vld [vmem:[%s1 + $0x220] sm:$0xff]
    %v88 = vld [vmem:[%s1 + $0x228] sm:$0xff]
    %v89 = vld [vmem:[%s1 + $0x230] sm:$0xff]
    %v90 = vld [vmem:[%s1 + $0x238] sm:$0xff]
    %v91 = vld [vmem:[%s1 + $0x240] sm:$0xff]
    %v92 = vld [vmem:[%s1 + $0x248] sm:$0xff]
    %v93 = vld [vmem:[%s1 + $0x250] sm:$0xff]
    %v94 = vld [vmem:[%s1 + $0x258] sm:$0xff]
    %v95 = vld [vmem:[%s1 + $0x260] sm:$0xff]
    %v96 = vld [vmem:[%s1 + $0x268] sm:$0xff]
    %v97 = vld [vmem:[%s1 + $0x270] sm:$0xff]
    %v98 = vld [vmem:[%s1 + $0x278] sm:$0xff]
    %v99 = vld [vmem:[%s1 + $0x280] sm:$0xff]
    %v100 = vld [vmem:[%s1 + $0x288] sm:$0xff]
    %v101 = vld [vmem:[%s1 + $0x290] sm:$0xff]
    %v102 = vld [vmem:[%s1 + $0x298] sm:$0xff]
    %v103 = vld [vmem:[%s1 + $0x2a0] sm:$0xff]
    %v104 = vld [vmem:[%s1 + $0x2a8] sm:$0xff]
    %v105 = vld [vmem:[%s1 + $0x2b0] sm:$0xff]
    %v106 = vld [vmem:[%s1 + $0x2b8] sm:$0xff]
    %v107 = vld [vmem:[%s1 + $0x2c0] sm:$0xff]
    %v108 = vld [vmem:[%s1 + $0x2c8] sm:$0xff]
    %v109 = vld [vmem:[%s1 + $0x2d0] sm:$0xff]
    %v110 = vld [vmem:[%s1 + $0x2d8] sm:$0xff]
    %v111 = vld [vmem:[%s1 + $0x2e0] sm:$0xff]
    %v112 = vld [vmem:[%s1 + $0x2e8] sm:$0xff]
    %v113 = vld [vmem:[%s1 + $0x2f0] sm:$0xff]
    %v114 = vld [vmem:[%s1 + $0x2f8] sm:$0xff]
    %v115 = vld [vmem:[%s1 + $0x300] sm:$0xff]
    %v116 = vld [vmem:[%s1 + $0x308] sm:$0xff]
    %v117 = vld [vmem:[%s1 + $0x310] sm:$0xff]
    %v118 = vld [vmem:[%s1 + $0x318] sm:$0xff]
    %v119 = vld [vmem:[%s1 + $0x320] sm:$0xff]
    %v120 = vld [vmem:[%s1 + $0x328] sm:$0xff]
    %v121 = vld [vmem:[%s1 + $0x330] sm:$0xff]
    %v122 = vld [vmem:[%s1 + $0x338] sm:$0xff]
    %v123 = vld [vmem:[%s1 + $0x340] sm:$0xff]
    %v124 = vld [vmem:[%s1 + $0x348] sm:$0xff]
    %v125 = vld [vmem:[%s1 + $0x350] sm:$0xff]
    %v126 = vld [vmem:[%s1 + $0x358] sm:$0xff]
    %v127 = vld [vmem:[%s1 + $0x360] sm:$0xff]
    %v128 = vld [vmem:[%s1 + $0x368] sm:$0xff]
    %v129 = vld [vmem:[%s1 + $0x370] sm:$0xff]
    %v130 = vld [vmem:[%s1 + $0x378] sm:$0xff]
    %v131 = vld [vmem:[%s1 + $0x380] sm:$0xff]
    %v132 = vld [vmem:[%s1 + $0x388] sm:$0xff]
    %v133 = vld [vmem:[%s1 + $0x390] sm:$0xff]
    %v134 = vld [vmem:[%s1 + $0x398] sm:$0xff]
    %v135 = vld [vmem:[%s1 + $0x3a0] sm:$0xff]
    %v136 = vld [vmem:[%s1 + $0x3a8] sm:$0xff]
    %v137 = vld [vmem:[%s1 + $0x3b0] sm:$0xff]
    %v138 = vld [vmem:[%s1 + $0x3b8] sm:$0xff]
    %v139 = vld [vmem:[%s1 + $0x3c0] sm:$0xff]
    %v140 = vld [vmem:[%s1 + $0x3c8] sm:$0xff]
    %v141 = vld [vmem:[%s1 + $0x3d0] sm:$0xff]
    %v142 = vld [vmem:[%s1 + $0x3d8] sm:$0xff]
    %v143 = vld [vmem:[%s1 + $0x3e0] sm:$0xff]
    %v144 = vld [vmem:[%s1 + $0x3e8] sm:$0xff]
    %v145 = vld [vmem:[%s1 + $0x3f0] sm:$0xff]
    %v146 = vld [vmem:[%s1 + $0x3f8] sm:$0xff]
    %v147 = vld [vmem:[%s1 + $0x400] sm:$0xff]
    %v148 = vld [vmem:[%s1 + $0x408] sm:$0xff]
    %v149 = vld [vmem:[%s1 + $0x410] sm:$0xff]
    %v150 = vld [vmem:[%s1 + $0x418] sm:$0xff]
    %v151 = vld [vmem:[%s1 + $0x420] sm:$0xff]
    %v152 = vld [vmem:[%s1 + $0x428] sm:$0xff]
    %v153 = vld [vmem:[%s1 + $0x430] sm:$0xff]
    %v154 = vld [vmem:[%s1 + $0x438] sm:$0xff]
    %v155 = vld [vmem:[%s1 + $0x440] sm:$0xff]
    %v156 = vld [vmem:[%s1 + $0x448] sm:$0xff]
    %v157 = vld [vmem:[%s1 + $0x450] sm:$0xff]
    %v158 = vld [vmem:[%s1 + $0x458] sm:$0xff]
    %v159 = vld [vmem:[%s1 + $0x460] sm:$0xff]
    %v160 = vld [vmem:[%s1 + $0x468] sm:$0xff]
    %v161 = vld [vmem:[%s1 + $0x470] sm:$0xff]
    %v162 = vld [vmem:[%s1 + $0x478] sm:$0xff]
    %v163 = vld [vmem:[%s1 + $0x480] sm:$0xff]
    %v164 = vld [vmem:[%s1 + $0x488] sm:$0xff]
    %v165 = vld [vmem:[%s1 + $0x490] sm:$0xff]
    %v166 = vld [vmem:[%s1 + $0x498] sm:$0xff]
    %v167 = vld [vmem:[%s1 + $0x4a0] sm:$0xff]
    %v168 = vld [vmem:[%s1 + $0x4a8] sm:$0xff]
    %v169 = vld [vmem:[%s1 + $0x4b0] sm:$0xff]
    %v170 = vld [vmem:[%s1 + $0x4b8] sm:$0xff]
    %v171 = vld [vmem:[%s1 + $0x4c0] sm:$0xff]
    %v172 = vld [vmem:[%s1 + $0x4c8] sm:$0xff]
    %v173 = vld [vmem:[%s1 + $0x4d0] sm:$0xff]
    %v174 = vld [vmem:[%s1 + $0x4d8] sm:$0xff]
    %v175 = vld [vmem:[%s1 + $0x4e0] sm:$0xff]
    %v176 = vld [vmem:[%s1 + $0x4e8] sm:$0xff]
    %v177 = vld [vmem:[%s1 + $0x4f0] sm:$0xff]
    %v178 = vld [vmem:[%s1 + $0x4f8] sm:$0xff]
    %v179 = vld [vmem:[%s1 + $0x500] sm:$0xff]
    %v180 = vld [vmem:[%s1 + $0x508] sm:$0xff]
    %v181 = vld [vmem:[%s1 + $0x510] sm:$0xff]
    %v182 = vld [vmem:[%s1 + $0x518] sm:$0xff]
    %v183 = vld [vmem:[%s1 + $0x520] sm:$0xff]
    %v184 = vld [vmem:[%s1 + $0x528] sm:$0xff]
    %v185 = vld [vmem:[%s1 + $0x530] sm:$0xff]
    %v186 = vld [vmem:[%s1 + $0x538] sm:$0xff]
    %v187 = vld [vmem:[%s1 + $0x540] sm:$0xff]
    %v188 = vld [vmem:[%s1 + $0x548] sm:$0xff]
    %v189 = vld [vmem:[%s1 + $0x550] sm:$0xff]
    %v190 = vld [vmem:[%s1 + $0x558] sm:$0xff]
    %v191 = vld [vmem:[%s1 + $0x560] sm:$0xff]
    %v192 = vld [vmem:[%s1 + $0x568] sm:$0xff]
    %v193 = vld [vmem:[%s1 + $0x570] sm:$0xff]
    %v194 = vld [vmem:[%s1 + $0x578] sm:$0xff]
    %v195 = vld [vmem:[%s1 + $0x580] sm:$0xff]
    %v196 = vld [vmem:[%s1 + $0x588] sm:$0xff]
    %v197 = vld [vmem:[%s1 + $0x590] sm:$0xff]
    %v198 = vld [vmem:[%s1 + $0x598] sm:$0xff]
    %v199 = vld [vmem:[%s1 + $0x5a0] sm:$0xff]
    %v200 = vld [vmem:[%s1 + $0x5a8] sm:$0xff]
    %v201 = vld [vmem:[%s1 + $0x5b0] sm:$0xff]
    %v202 = vld [vmem:[%s1 + $0x5b8] sm:$0xff]
    %v203 = vld [vmem:[%s1 + $0x5c0] sm:$0xff]
    %v204 = vld [vmem:[%s1 + $0x5c8] sm:$0xff]
    %v205 = vld [vmem:[%s1 + $0x5d0] sm:$0xff]
    %v206 = vld [vmem:[%s1 + $0x5d8] sm:$0xff]
    %v207 = vld [vmem:[%s1 + $0x5e0] sm:$0xff]
    %v208 = vld [vmem:[%s1 + $0x5e8] sm:$0xff]
    %v209 = vld [vmem:[%s1 + $0x5f0] sm:$0xff]
    %v210 = vld [vmem:[%s1 + $0x5f8] sm:$0xff]
    %v211 = vld [vmem:[%s1 + $0x600] sm:$0xff]
    %v212 = vld [vmem:[%s1 + $0x608] sm:$0xff]
    %v213 = vld [vmem:[%s1 + $0x610] sm:$0xff]
    %v214 = vld [vmem:[%s1 + $0x618] sm:$0xff]
    %v215 = vld [vmem:[%s2] sm:$0x1]
    %v217 = vperm.slane %v215, 0
    %223 = vst [vmem:[#allocation1] ss:$4 sm:$0xff] %v15
    %s224 = scalar_lea.vmem [#allocation1], 32
    %225 = vst [vmem:[%s224] ss:$4 sm:$0xff] %v16
    %v226 = vld.sshfl [vmem:[#allocation1] sm:$0xff pattern:$0x73625140]
    %v227 = vld.sshfl [vmem:[#allocation1 + $0x8] sm:$0xff pattern:$0x73625140]
    %v228 = vld.sshfl [vmem:[#allocation1 + $0x10] sm:$0xff pattern:$0x73625140]
    %v229 = vld.sshfl [vmem:[#allocation1 + $0x18] sm:$0xff pattern:$0x73625140]
    %v230 = vld.sshfl [vmem:[#allocation1 + $0x20] sm:$0xff pattern:$0x73625140]
    %v231 = vld.sshfl [vmem:[#allocation1 + $0x28] sm:$0xff pattern:$0x73625140]
    %v232 = vld.sshfl [vmem:[#allocation1 + $0x30] sm:$0xff pattern:$0x73625140]
    %v233 = vld.sshfl [vmem:[#allocation1 + $0x38] sm:$0xff pattern:$0x73625140]
    %234 = vst [vmem:[#allocation1] ss:$4 sm:$0xff] %v17
    %235 = vst [vmem:[%s224] ss:$4 sm:$0xff] %v18
    %v236 = vld.sshfl [vmem:[#allocation1] sm:$0xff pattern:$0x73625140]
    %v237 = vld.sshfl [vmem:[#allocation1 + $0x8] sm:$0xff pattern:$0x73625140]
    %v238 = vld.sshfl [vmem:[#allocation1 + $0x10] sm:$0xff pattern:$0x73625140]
    %v239 = vld.sshfl [vmem:[#allocation1 + $0x18] sm:$0xff pattern:$0x73625140]
    %v240 = vld.sshfl [vmem:[#allocation1 + $0x20] sm:$0xff pattern:$0x73625140]
    %vm253 = vcmask 261120
    %v254 = vsel %vm253, %v240, 0
    %256 = vmatpush.msra.mxu0 %v34
    %257 = vmatpush.msra.mxu0 %v33
    %258 = vmatpush.msra.mxu0 %v32
    %259 = vmatpush.msra.mxu0 %v31
    %260 = vmatpush.msra.mxu0 %v30
    %261 = vmatpush.msra.mxu0 %v29
    %262 = vmatpush.msra.mxu0 %v28
    %263 = vmatpush.msra.mxu0 %v27
    %264 = vmatpush.msra.mxu0 %v26
    %265 = vmatpush.msra.mxu0 %v25
    %266 = vmatpush.msra.mxu0 %v24
    %267 = vmatpush.msra.mxu0 %v23
    %268 = vmatpush.msra.mxu0 %v22
    %269 = vmatpush.msra.mxu0 %v21
    %270 = vmatpush.msra.mxu0 %v20
    %271 = vmatpush.msra.mxu0 %v19
    %272 = vmatmul.f32.gmra.mxu0 %v226
    %v273 = vpop.f32.mrf.mxu0
    %v274 = vadd.f32 %v217, %v273
    %275 = vdwg.mxu0
    %276 = vmatpush.msra.mxu0 %v50
    %277 = vmatpush.msra.mxu0 %v49
    %278 = vmatpush.msra.mxu0 %v48
    %279 = vmatpush.msra.mxu0 %v47
    %280 = vmatpush.msra.mxu0 %v46
    %281 = vmatpush.msra.mxu0 %v45
    %282 = vmatpush.msra.mxu0 %v44
    %283 = vmatpush.msra.mxu0 %v43
    %284 = vmatpush.msra.mxu0 %v42
    %285 = vmatpush.msra.mxu0 %v41
    %286 = vmatpush.msra.mxu0 %v40
    %287 = vmatpush.msra.mxu0 %v39
    %288 = vmatpush.msra.mxu0 %v38
    %289 = vmatpush.msra.mxu0 %v37
    %290 = vmatpush.msra.mxu0 %v36
    %291 = vmatpush.msra.mxu0 %v35
    %292 = vmatmul.f32.gmra.mxu0 %v227
    %v293 = vpop.f32.mrf.mxu0
    %v294 = vadd.f32 %v274, %v293
    %295 = vdwg.mxu0
    %296 = vmatpush.msra.mxu0 %v66
    %297 = vmatpush.msra.mxu0 %v65
    %298 = vmatpush.msra.mxu0 %v64
    %299 = vmatpush.msra.mxu0 %v63
    %300 = vmatpush.msra.mxu0 %v62
    %301 = vmatpush.msra.mxu0 %v61
    %302 = vmatpush.msra.mxu0 %v60
    %303 = vmatpush.msra.mxu0 %v59
    %304 = vmatpush.msra.mxu0 %v58
    %305 = vmatpush.msra.mxu0 %v57
    %306 = vmatpush.msra.mxu0 %v56
    %307 = vmatpush.msra.mxu0 %v55
    %308 = vmatpush.msra.mxu0 %v54
    %309 = vmatpush.msra.mxu0 %v53
    %310 = vmatpush.msra.mxu0 %v52
    %311 = vmatpush.msra.mxu0 %v51
    %312 = vmatmul.f32.gmra.mxu0 %v228
    %v313 = vpop.f32.mrf.mxu0
    %v314 = vadd.f32 %v294, %v313
    %315 = vdwg.mxu0
    %316 = vmatpush.msra.mxu0 %v82
    %317 = vmatpush.msra.mxu0 %v81
    %318 = vmatpush.msra.mxu0 %v80
    %319 = vmatpush.msra.mxu0 %v79
    %320 = vmatpush.msra.mxu0 %v78
    %321 = vmatpush.msra.mxu0 %v77
    %322 = vmatpush.msra.mxu0 %v76
    %323 = vmatpush.msra.mxu0 %v75
    %324 = vmatpush.msra.mxu0 %v74
    %325 = vmatpush.msra.mxu0 %v73
    %326 = vmatpush.msra.mxu0 %v72
    %327 = vmatpush.msra.mxu0 %v71
    %328 = vmatpush.msra.mxu0 %v70
    %329 = vmatpush.msra.mxu0 %v69
    %330 = vmatpush.msra.mxu0 %v68
    %331 = vmatpush.msra.mxu0 %v67
    %332 = vmatmul.f32.gmra.mxu0 %v229
    %v333 = vpop.f32.mrf.mxu0
    %v334 = vadd.f32 %v314, %v333
    %335 = vdwg.mxu0
    %336 = vmatpush.msra.mxu0 %v98
    %337 = vmatpush.msra.mxu0 %v97
    %338 = vmatpush.msra.mxu0 %v96
    %339 = vmatpush.msra.mxu0 %v95
    %340 = vmatpush.msra.mxu0 %v94
    %341 = vmatpush.msra.mxu0 %v93
    %342 = vmatpush.msra.mxu0 %v92
    %343 = vmatpush.msra.mxu0 %v91
    %344 = vmatpush.msra.mxu0 %v90
    %345 = vmatpush.msra.mxu0 %v89
    %346 = vmatpush.msra.mxu0 %v88
    %347 = vmatpush.msra.mxu0 %v87
    %348 = vmatpush.msra.mxu0 %v86
    %349 = vmatpush.msra.mxu0 %v85
    %350 = vmatpush.msra.mxu0 %v84
    %351 = vmatpush.msra.mxu0 %v83
    %352 = vmatmul.f32.gmra.mxu0 %v230
    %v353 = vpop.f32.mrf.mxu0
    %v354 = vadd.f32 %v334, %v353
    %355 = vdwg.mxu0
    %356 = vmatpush.msra.mxu0 %v114
    %357 = vmatpush.msra.mxu0 %v113
    %358 = vmatpush.msra.mxu0 %v112
    %359 = vmatpush.msra.mxu0 %v111
    %360 = vmatpush.msra.mxu0 %v110
    %361 = vmatpush.msra.mxu0 %v109
    %362 = vmatpush.msra.mxu0 %v108
    %363 = vmatpush.msra.mxu0 %v107
    %364 = vmatpush.msra.mxu0 %v106
    %365 = vmatpush.msra.mxu0 %v105
    %366 = vmatpush.msra.mxu0 %v104
    %367 = vmatpush.msra.mxu0 %v103
    %368 = vmatpush.msra.mxu0 %v102
    %369 = vmatpush.msra.mxu0 %v101
    %370 = vmatpush.msra.mxu0 %v100
    %371 = vmatpush.msra.mxu0 %v99
    %372 = vmatmul.f32.gmra.mxu0 %v231
    %v373 = vpop.f32.mrf.mxu0
    %v374 = vadd.f32 %v354, %v373
    %375 = vdwg.mxu0
    %376 = vmatpush.msra.mxu0 %v130
    %377 = vmatpush.msra.mxu0 %v129
    %378 = vmatpush.msra.mxu0 %v128
    %379 = vmatpush.msra.mxu0 %v127
    %380 = vmatpush.msra.mxu0 %v126
    %381 = vmatpush.msra.mxu0 %v125
    %382 = vmatpush.msra.mxu0 %v124
    %383 = vmatpush.msra.mxu0 %v123
    %384 = vmatpush.msra.mxu0 %v122
    %385 = vmatpush.msra.mxu0 %v121
    %386 = vmatpush.msra.mxu0 %v120
    %387 = vmatpush.msra.mxu0 %v119
    %388 = vmatpush.msra.mxu0 %v118
    %389 = vmatpush.msra.mxu0 %v117
    %390 = vmatpush.msra.mxu0 %v116
    %391 = vmatpush.msra.mxu0 %v115
    %392 = vmatmul.f32.gmra.mxu0 %v232
    %v393 = vpop.f32.mrf.mxu0
    %v394 = vadd.f32 %v374, %v393
    %395 = vdwg.mxu0
    %396 = vmatpush.msra.mxu0 %v146
    %397 = vmatpush.msra.mxu0 %v145
    %398 = vmatpush.msra.mxu0 %v144
    %399 = vmatpush.msra.mxu0 %v143
    %400 = vmatpush.msra.mxu0 %v142
    %401 = vmatpush.msra.mxu0 %v141
    %402 = vmatpush.msra.mxu0 %v140
    %403 = vmatpush.msra.mxu0 %v139
    %404 = vmatpush.msra.mxu0 %v138
    %405 = vmatpush.msra.mxu0 %v137
    %406 = vmatpush.msra.mxu0 %v136
    %407 = vmatpush.msra.mxu0 %v135
    %408 = vmatpush.msra.mxu0 %v134
    %409 = vmatpush.msra.mxu0 %v133
    %410 = vmatpush.msra.mxu0 %v132
    %411 = vmatpush.msra.mxu0 %v131
    %412 = vmatmul.f32.gmra.mxu0 %v233
    %v413 = vpop.f32.mrf.mxu0
    %v414 = vadd.f32 %v394, %v413
    %415 = vdwg.mxu0
    %416 = vmatpush.msra.mxu0 %v162
    %417 = vmatpush.msra.mxu0 %v161
    %418 = vmatpush.msra.mxu0 %v160
    %419 = vmatpush.msra.mxu0 %v159
    %420 = vmatpush.msra.mxu0 %v158
    %421 = vmatpush.msra.mxu0 %v157
    %422 = vmatpush.msra.mxu0 %v156
    %423 = vmatpush.msra.mxu0 %v155
    %424 = vmatpush.msra.mxu0 %v154
    %425 = vmatpush.msra.mxu0 %v153
    %426 = vmatpush.msra.mxu0 %v152
    %427 = vmatpush.msra.mxu0 %v151
    %428 = vmatpush.msra.mxu0 %v150
    %429 = vmatpush.msra.mxu0 %v149
    %430 = vmatpush.msra.mxu0 %v148
    %431 = vmatpush.msra.mxu0 %v147
    %432 = vmatmul.f32.gmra.mxu0 %v236
    %v433 = vpop.f32.mrf.mxu0
    %v434 = vadd.f32 %v414, %v433
    %435 = vdwg.mxu0
    %436 = vmatpush.msra.mxu0 %v178
    %437 = vmatpush.msra.mxu0 %v177
    %438 = vmatpush.msra.mxu0 %v176
    %439 = vmatpush.msra.mxu0 %v175
    %440 = vmatpush.msra.mxu0 %v174
    %441 = vmatpush.msra.mxu0 %v173
    %442 = vmatpush.msra.mxu0 %v172
    %443 = vmatpush.msra.mxu0 %v171
    %444 = vmatpush.msra.mxu0 %v170
    %445 = vmatpush.msra.mxu0 %v169
    %446 = vmatpush.msra.mxu0 %v168
    %447 = vmatpush.msra.mxu0 %v167
    %448 = vmatpush.msra.mxu0 %v166
    %449 = vmatpush.msra.mxu0 %v165
    %450 = vmatpush.msra.mxu0 %v164
    %451 = vmatpush.msra.mxu0 %v163
    %452 = vmatmul.f32.gmra.mxu0 %v237
    %v453 = vpop.f32.mrf.mxu0
    %v454 = vadd.f32 %v434, %v453
    %455 = vdwg.mxu0
    %456 = vmatpush.msra.mxu0 %v194
    %457 = vmatpush.msra.mxu0 %v193
    %458 = vmatpush.msra.mxu0 %v192
    %459 = vmatpush.msra.mxu0 %v191
    %460 = vmatpush.msra.mxu0 %v190
    %461 = vmatpush.msra.mxu0 %v189
    %462 = vmatpush.msra.mxu0 %v188
    %463 = vmatpush.msra.mxu0 %v187
    %464 = vmatpush.msra.mxu0 %v186
    %465 = vmatpush.msra.mxu0 %v185
    %466 = vmatpush.msra.mxu0 %v184
    %467 = vmatpush.msra.mxu0 %v183
    %468 = vmatpush.msra.mxu0 %v182
    %469 = vmatpush.msra.mxu0 %v181
    %470 = vmatpush.msra.mxu0 %v180
    %471 = vmatpush.msra.mxu0 %v179
    %472 = vmatmul.f32.gmra.mxu0 %v238
    %v473 = vpop.f32.mrf.mxu0
    %v474 = vadd.f32 %v454, %v473
    %475 = vdwg.mxu0
    %476 = vmatpush.msra.mxu0 %v210
    %477 = vmatpush.msra.mxu0 %v209
    %478 = vmatpush.msra.mxu0 %v208
    %479 = vmatpush.msra.mxu0 %v207
    %480 = vmatpush.msra.mxu0 %v206
    %481 = vmatpush.msra.mxu0 %v205
    %482 = vmatpush.msra.mxu0 %v204
    %483 = vmatpush.msra.mxu0 %v203
    %484 = vmatpush.msra.mxu0 %v202
    %485 = vmatpush.msra.mxu0 %v201
    %486 = vmatpush.msra.mxu0 %v200
    %487 = vmatpush.msra.mxu0 %v199
    %488 = vmatpush.msra.mxu0 %v198
    %489 = vmatpush.msra.mxu0 %v197
    %490 = vmatpush.msra.mxu0 %v196
    %491 = vmatpush.msra.mxu0 %v195
    %492 = vmatmul.f32.gmra.mxu0 %v239
    %v493 = vpop.f32.mrf.mxu0
    %v494 = vadd.f32 %v474, %v493
    %495 = vdwg.mxu0
    %496 = vmatpush.msra.mxu0 0.0
    %497 = vmatpush.msra.mxu0 0.0
    %498 = vmatpush.msra.mxu0 0.0
    %499 = vmatpush.msra.mxu0 0.0
    %500 = vmatpush.msra.mxu0 0.0
    %501 = vmatpush.msra.mxu0 0.0
    %502 = vmatpush.msra.mxu0 0.0
    %503 = vmatpush.msra.mxu0 0.0
    %504 = vmatpush.msra.mxu0 0.0
    %505 = vmatpush.msra.mxu0 0.0
    %506 = vmatpush.msra.mxu0 0.0
    %507 = vmatpush.msra.mxu0 0.0
    %508 = vmatpush.msra.mxu0 %v214
    %509 = vmatpush.msra.mxu0 %v213
    %510 = vmatpush.msra.mxu0 %v212
    %511 = vmatpush.msra.mxu0 %v211
    %512 = vmatmul.f32.gmra.mxu0 %v254
    %v513 = vpop.f32.mrf.mxu0
    %v514 = vadd.f32 %v494, %v513
    %515 = vdwg.mxu0
    %vm516 = vcmask 74752
    %517 = vst.msk [vmem:[#allocation2] sm:$0x3] %vm516, %v514
    // Predicated region
    $region14: #{cnn_forward.5} parent=1 // pred_check
      _
    $region15: #{cnn_forward.5} parent=1 // pred_check_branch
      %519 = sbr.rel (0) target = $region17
    $region16: #{cnn_forward.5} parent=1 // pred_region
      %521 = vsyncadd [#allocation3], 0
      %s523 = sshll.u32 [#allocation2], 4
      %s524 = int_to_ptr.vmem [resolvable:$true] %s523
      %s525 = sshll.u32 %s3, 4
      %s526 = int_to_ptr.hbm [resolvable:$true] %s525
      %528 = dma.vmem_to_hbm [thread:$0]  %s524, 32, %s526, [#allocation3]
    $region17: #{cnn_forward.5} parent=1 // pred_fallthru
      _
    // Predicated region
    $region18: #{cnn_forward.5} parent=1 // pred_check
      _
    $region19: #{cnn_forward.5} parent=1 // pred_check_branch
      %530 = sbr.rel (0) target = $region21
    $region20: #{cnn_forward.5} parent=1 // pred_region
      %532 = dma.done [#allocation3], 32
    $region21: #{cnn_forward.5} parent=1 // pred_fallthru
      _
    %533 = vsyncpa [#allocation3], 1

</llo_original>
